<compile_context>
chip_gen: v7x
topology: tpu7x:2x2x1
jax: 0.10.0
libtpu: 0.0.40
codegen_flags: <defaults>
</compile_context>

<pallas_src>
import jax
import jax.numpy as jnp
from jax.experimental import pallas as pl
from jax.experimental.pallas import tpu as pltpu


# --------------------------------------------------------------------------- #
# Weight folding: conv taps -> lane-dense Toeplitz RHS matrices (wrapper side) #
# --------------------------------------------------------------------------- #
def _fold_conv_rhs(wgt, w_in):
    """Fold a (Cout, Cin, KH, KW) stride-2 'valid' conv weight into KH matrices.

    T[i, w_in*Cin + ci, w_out*Cout + co] = wgt[co, ci, i, w_in - 2*w_out]
    (zero where the tap falls outside the kernel support), so one
    (rows, W_in*Cin) @ T[i] matmul applies kernel row i at every output column.
    """
    cout, cin, kh, kw = wgt.shape
    w_out = (w_in - kw) // 2 + 1
    j = jnp.arange(kw)[:, None, None]
    p = jnp.arange(w_in)[None, :, None]
    q = jnp.arange(w_out)[None, None, :]
    mask = (p == 2 * q + j).astype(wgt.dtype)            # (kw, w_in, w_out)
    t = jnp.einsum("jpq,cdij->ipdqc", mask, wgt)         # (kh, w_in, cin, w_out, cout)
    return t.reshape(kh, w_in * cin, w_out * cout)


# ------------------------------ Pallas kernel ------------------------------ #
def _make_encoder_kernel(oh1, ow1, oh2, ow2, oh3, ow3, c1, c2, c3):
    kh1, kh2, kh3 = 5, 3, 3
    a1 = oh1 // 2                     # rows per parity class of layer-1 output

    def kernel(x_ref, t1_ref, t2_ref, t3_ref, b1_ref, b2_ref, b3_ref,
               o_ref, h1_ref, h2_ref):
        # -------- layer 1: 5x5 s2 conv, 1 -> c1, + ReLU  (MXU) -------------- #
        # Output rows oh1 = 2*a + p are produced per parity class p so that the
        # next layer's stride-2 row access becomes a contiguous slice.
        for p in range(2):
            acc = jnp.zeros((a1, ow1 * c1), jnp.float32)
            for i in range(kh1):
                r = (2 * p + i) % 4            # residue class of the input row
                off = (2 * p + i) // 4         # offset inside that class
                lhs = x_ref[r, 0, off:off + a1, :]               # (a1, W)
                acc = acc + jnp.dot(lhs, t1_ref[i],
                                    preferred_element_type=jnp.float32)
            h1_ref[p:p + 1] = jnp.maximum(acc + b1_ref[...], 0.0)[None]

        # -------- layer 2: 3x3 s2 conv, c1 -> c2, + ReLU  (MXU) ------------- #
        acc2 = jnp.zeros((oh2, ow2 * c2), jnp.float32)
        for i in range(kh2):
            lhs = h1_ref[i % 2, i // 2:i // 2 + oh2, :]          # (oh2, ow1*c1)
            acc2 = acc2 + jnp.dot(lhs, t2_ref[i],
                                  preferred_element_type=jnp.float32)
        h2_ref[...] = jnp.maximum(acc2 + b2_ref[...], 0.0)       # (oh2, ow2*c2)

        # -------- layer 3: 3x3 s2 conv, c2 -> c3, + ReLU  (MXU) ------------- #
        for oh in range(oh3):
            acc3 = jnp.zeros((1, ow3 * c3), jnp.float32)
            for i in range(kh3):
                row = 2 * oh + i
                lhs = h2_ref[row:row + 1, :]                     # (1, ow2*c2)
                acc3 = acc3 + jnp.dot(lhs, t3_ref[i],
                                      preferred_element_type=jnp.float32)
            o_ref[0:1, oh:oh + 1, :] = jnp.maximum(acc3 + b3_ref[...], 0.0)[None]

    return kernel


# --------------------------------- Encoder --------------------------------- #
def encoder_forward(x_nchw, params):
    (w1, b1), (w2, b2), (w3, b3) = params
    n, cin, h, w = x_nchw.shape
    assert cin == 1 and h % 4 == 0, "kernel assumes Cin=1 and H % 4 == 0"
    oh1, ow1 = (h - 5) // 2 + 1, (w - 5) // 2 + 1
    oh2, ow2 = (oh1 - 3) // 2 + 1, (ow1 - 3) // 2 + 1
    oh3, ow3 = (oh2 - 3) // 2 + 1, (ow2 - 3) // 2 + 1
    assert oh1 % 2 == 0, "layer-1 output height must be even for the row split"
    a1 = oh1 // 2
    assert a1 + 1 <= h // 4 and oh2 + 1 <= a1
    c1, c2, c3 = w1.shape[0], w2.shape[0], w3.shape[0]

    # -- entry layout glue (done once): x_split[r, n, q, :] = x[n, 0, 4q+r, :] --
    x_split = x_nchw[:, 0].reshape(n, h // 4, 4, w).transpose(2, 0, 1, 3)

    # -- fold conv weights/biases into lane-dense operands (weights only) ------
    t1 = _fold_conv_rhs(w1, w)        # (5, W,       ow1*c1)
    t2 = _fold_conv_rhs(w2, ow1)      # (3, ow1*c1,  ow2*c2)
    t3 = _fold_conv_rhs(w3, ow2)      # (3, ow2*c2,  ow3*c3)
    b1r = jnp.tile(b1, ow1)[None, :]  # (1, ow1*c1)
    b2r = jnp.tile(b2, ow2)[None, :]  # (1, ow2*c2)
    b3r = jnp.tile(b3, ow3)[None, :]  # (1, ow3*c3)

    kernel = _make_encoder_kernel(oh1, ow1, oh2, ow2, oh3, ow3, c1, c2, c3)
    out = pl.pallas_call(
        kernel,
        out_shape=jax.ShapeDtypeStruct((n, oh3, ow3 * c3), jnp.float32),
        grid=(n,),
        in_specs=[
            pl.BlockSpec((4, 1, h // 4, w), lambda b: (0, b, 0, 0)),
            pl.BlockSpec(t1.shape, lambda b: (0, 0, 0)),
            pl.BlockSpec(t2.shape, lambda b: (0, 0, 0)),
            pl.BlockSpec(t3.shape, lambda b: (0, 0, 0)),
            pl.BlockSpec(b1r.shape, lambda b: (0, 0)),
            pl.BlockSpec(b2r.shape, lambda b: (0, 0)),
            pl.BlockSpec(b3r.shape, lambda b: (0, 0)),
        ],
        out_specs=pl.BlockSpec((1, oh3, ow3 * c3), lambda b: (b, 0, 0)),
        scratch_shapes=[
            pltpu.VMEM((2, a1, ow1 * c1), jnp.float32),   # layer-1 activations
            pltpu.VMEM((oh2, ow2 * c2), jnp.float32),     # layer-2 activations
        ],
        compiler_params=pltpu.CompilerParams(
            dimension_semantics=("parallel",)),
    )(x_split, t1, t2, t3, b1r, b2r, b3r)

    # -- exit layout glue (done once): (n, oh3, ow3*c3) -> NCHW ---------------
    return out.reshape(n, oh3, ow3, c3).transpose(0, 3, 1, 2)


def init_encoder_params(key):
    """Deterministic init mirroring nn.Conv2d default (uniform +/- 1/sqrt(fan_in))."""
    shapes = [((8, 1, 5, 5), (8,)), ((16, 8, 3, 3), (16,)), ((32, 16, 3, 3), (32,))]
    params = []
    for wshape, bshape in shapes:
        key, kw_, kb_ = jax.random.split(key, 3)
        fan_in = wshape[1] * wshape[2] * wshape[3]
        bound = 1.0 / jnp.sqrt(jnp.float32(fan_in))
        wgt = jax.random.uniform(kw_, wshape, jnp.float32, -bound, bound)
        bia = jax.random.uniform(kb_, bshape, jnp.float32, -bound, bound)
        params.append((wgt, bia))
    return params


def encoder_reference(x_nchw, params):
    """Pure-JAX reference (lax conv) for correctness checking."""
    y = x_nchw
    for wgt, bia in params:
        y = jax.lax.conv_general_dilated(
            y, wgt, window_strides=(2, 2), padding="VALID",
            dimension_numbers=("NCHW", "OIHW", "NCHW"))
        y = jnp.maximum(y + bia[None, :, None, None], 0.0)
    return y


if __name__ == "__main__":
    key = jax.random.PRNGKey(0)
    kx, kp = jax.random.split(key)

    # Input consistent with Conv2d(1, ...): N=2, C=1, H=W=28 (MNIST-like).
    x = jax.random.normal(kx, (2, 1, 28, 28), jnp.float32)
    params = init_encoder_params(kp)

    out = jax.block_until_ready(jax.jit(encoder_forward)(x, params))

    # Expected shape chain: (2,1,28,28) -> (2,8,12,12) -> (2,16,5,5) -> (2,32,2,2)
    assert out.shape == (2, 32, 2, 2), out.shape

    ref = jax.block_until_ready(encoder_reference(x, params))
    assert jnp.allclose(out, ref, atol=1e-4, rtol=1e-4), \
        float(jnp.max(jnp.abs(out - ref)))

    print("KERNEL_OK")
</pallas_src>

<mosaic_0001>
module attributes {stable_mosaic.version = 11 : i64} {
  func.func @kernel(%arg0: i32, %arg1: memref<4x1x7x28xf32, #tpu.memory_space<vmem>>, %arg2: memref<5x28x96xf32, #tpu.memory_space<vmem>>, %arg3: memref<3x96x80xf32, #tpu.memory_space<vmem>>, %arg4: memref<3x80x64xf32, #tpu.memory_space<vmem>>, %arg5: memref<1x96xf32, #tpu.memory_space<vmem>>, %arg6: memref<1x80xf32, #tpu.memory_space<vmem>>, %arg7: memref<1x64xf32, #tpu.memory_space<vmem>>, %arg8: memref<1x2x64xf32, #tpu.memory_space<vmem>>, %arg9: memref<2x6x96xf32, #tpu.memory_space<vmem>>, %arg10: memref<5x80xf32, #tpu.memory_space<vmem>>) attributes {dimension_semantics = [#tpu.dimension_semantics<parallel>], iteration_bounds = array<i64: 2>, scalar_prefetch = 0 : i64, scratch_operands = 2 : i64, tpu.core_type = #tpu.core_type<tc>, window_params = [{transform_indices = @transform_0, window_bounds = array<i64: 4, 1, 7, 28>}, {pipeline_mode = #tpu.pipeline_mode<synchronous>, transform_indices = @transform_1, window_bounds = array<i64: 5, 28, 96>}, {pipeline_mode = #tpu.pipeline_mode<synchronous>, transform_indices = @transform_2, window_bounds = array<i64: 3, 96, 80>}, {pipeline_mode = #tpu.pipeline_mode<synchronous>, transform_indices = @transform_3, window_bounds = array<i64: 3, 80, 64>}, {pipeline_mode = #tpu.pipeline_mode<synchronous>, transform_indices = @transform_4, window_bounds = array<i64: 1, 96>}, {pipeline_mode = #tpu.pipeline_mode<synchronous>, transform_indices = @transform_5, window_bounds = array<i64: 1, 80>}, {pipeline_mode = #tpu.pipeline_mode<synchronous>, transform_indices = @transform_6, window_bounds = array<i64: 1, 64>}, {transform_indices = @transform_7, window_bounds = array<i64: 1, 2, 64>}]} {
    %cst = arith.constant 0.000000e+00 : f32
    %0 = vector.broadcast %cst : f32 to vector<6x96xf32>
    %c0 = arith.constant 0 : index
    %c0_0 = arith.constant 0 : index
    %c0_1 = arith.constant 0 : index
    %c0_2 = arith.constant 0 : index
    %1 = vector.load %arg1[%c0, %c0_0, %c0_1, %c0_2] : memref<4x1x7x28xf32, #tpu.memory_space<vmem>>, vector<1x1x6x28xf32>
    %2 = vector.shape_cast %1 : vector<1x1x6x28xf32> to vector<6x28xf32>
    %c0_3 = arith.constant 0 : index
    %c0_4 = arith.constant 0 : index
    %c0_5 = arith.constant 0 : index
    %3 = vector.load %arg2[%c0_3, %c0_4, %c0_5] : memref<5x28x96xf32, #tpu.memory_space<vmem>>, vector<1x28x96xf32>
    %4 = vector.shape_cast %3 : vector<1x28x96xf32> to vector<28x96xf32>
    %cst_6 = arith.constant dense<0.000000e+00> : vector<6x96xf32>
    %5 = tpu.matmul %2, %4, %cst_6 {dimension_numbers = #tpu.dot_dimension_numbers<[1], [0], [0], [1], [0, 0, 1, 1], [], []>} : vector<6x28xf32>, vector<28x96xf32>, vector<6x96xf32> -> vector<6x96xf32>
    %6 = arith.addf %0, %5 : vector<6x96xf32>
    %c1 = arith.constant 1 : index
    %c0_7 = arith.constant 0 : index
    %c0_8 = arith.constant 0 : index
    %c0_9 = arith.constant 0 : index
    %7 = vector.load %arg1[%c1, %c0_7, %c0_8, %c0_9] : memref<4x1x7x28xf32, #tpu.memory_space<vmem>>, vector<1x1x6x28xf32>
    %8 = vector.shape_cast %7 : vector<1x1x6x28xf32> to vector<6x28xf32>
    %c1_10 = arith.constant 1 : index
    %c0_11 = arith.constant 0 : index
    %c0_12 = arith.constant 0 : index
    %9 = vector.load %arg2[%c1_10, %c0_11, %c0_12] : memref<5x28x96xf32, #tpu.memory_space<vmem>>, vector<1x28x96xf32>
    %10 = vector.shape_cast %9 : vector<1x28x96xf32> to vector<28x96xf32>
    %cst_13 = arith.constant dense<0.000000e+00> : vector<6x96xf32>
    %11 = tpu.matmul %8, %10, %cst_13 {dimension_numbers = #tpu.dot_dimension_numbers<[1], [0], [0], [1], [0, 0, 1, 1], [], []>} : vector<6x28xf32>, vector<28x96xf32>, vector<6x96xf32> -> vector<6x96xf32>
    %12 = arith.addf %6, %11 : vector<6x96xf32>
    %c2 = arith.constant 2 : index
    %c0_14 = arith.constant 0 : index
    %c0_15 = arith.constant 0 : index
    %c0_16 = arith.constant 0 : index
    %13 = vector.load %arg1[%c2, %c0_14, %c0_15, %c0_16] : memref<4x1x7x28xf32, #tpu.memory_space<vmem>>, vector<1x1x6x28xf32>
    %14 = vector.shape_cast %13 : vector<1x1x6x28xf32> to vector<6x28xf32>
    %c2_17 = arith.constant 2 : index
    %c0_18 = arith.constant 0 : index
    %c0_19 = arith.constant 0 : index
    %15 = vector.load %arg2[%c2_17, %c0_18, %c0_19] : memref<5x28x96xf32, #tpu.memory_space<vmem>>, vector<1x28x96xf32>
    %16 = vector.shape_cast %15 : vector<1x28x96xf32> to vector<28x96xf32>
    %cst_20 = arith.constant dense<0.000000e+00> : vector<6x96xf32>
    %17 = tpu.matmul %14, %16, %cst_20 {dimension_numbers = #tpu.dot_dimension_numbers<[1], [0], [0], [1], [0, 0, 1, 1], [], []>} : vector<6x28xf32>, vector<28x96xf32>, vector<6x96xf32> -> vector<6x96xf32>
    %18 = arith.addf %12, %17 : vector<6x96xf32>
    %c3 = arith.constant 3 : index
    %c0_21 = arith.constant 0 : index
    %c0_22 = arith.constant 0 : index
    %c0_23 = arith.constant 0 : index
    %19 = vector.load %arg1[%c3, %c0_21, %c0_22, %c0_23] : memref<4x1x7x28xf32, #tpu.memory_space<vmem>>, vector<1x1x6x28xf32>
    %20 = vector.shape_cast %19 : vector<1x1x6x28xf32> to vector<6x28xf32>
    %c3_24 = arith.constant 3 : index
    %c0_25 = arith.constant 0 : index
    %c0_26 = arith.constant 0 : index
    %21 = vector.load %arg2[%c3_24, %c0_25, %c0_26] : memref<5x28x96xf32, #tpu.memory_space<vmem>>, vector<1x28x96xf32>
    %22 = vector.shape_cast %21 : vector<1x28x96xf32> to vector<28x96xf32>
    %cst_27 = arith.constant dense<0.000000e+00> : vector<6x96xf32>
    %23 = tpu.matmul %20, %22, %cst_27 {dimension_numbers = #tpu.dot_dimension_numbers<[1], [0], [0], [1], [0, 0, 1, 1], [], []>} : vector<6x28xf32>, vector<28x96xf32>, vector<6x96xf32> -> vector<6x96xf32>
    %24 = arith.addf %18, %23 : vector<6x96xf32>
    %c0_28 = arith.constant 0 : index
    %c0_29 = arith.constant 0 : index
    %c1_30 = arith.constant 1 : index
    %c0_31 = arith.constant 0 : index
    %25 = vector.load %arg1[%c0_28, %c0_29, %c1_30, %c0_31] : memref<4x1x7x28xf32, #tpu.memory_space<vmem>>, vector<1x1x6x28xf32>
    %26 = vector.shape_cast %25 : vector<1x1x6x28xf32> to vector<6x28xf32>
    %c4 = arith.constant 4 : index
    %c0_32 = arith.constant 0 : index
    %c0_33 = arith.constant 0 : index
    %27 = vector.load %arg2[%c4, %c0_32, %c0_33] : memref<5x28x96xf32, #tpu.memory_space<vmem>>, vector<1x28x96xf32>
    %28 = vector.shape_cast %27 : vector<1x28x96xf32> to vector<28x96xf32>
    %cst_34 = arith.constant dense<0.000000e+00> : vector<6x96xf32>
    %29 = tpu.matmul %26, %28, %cst_34 {dimension_numbers = #tpu.dot_dimension_numbers<[1], [0], [0], [1], [0, 0, 1, 1], [], []>} : vector<6x28xf32>, vector<28x96xf32>, vector<6x96xf32> -> vector<6x96xf32>
    %30 = arith.addf %24, %29 : vector<6x96xf32>
    %c0_35 = arith.constant 0 : index
    %c0_36 = arith.constant 0 : index
    %31 = vector.load %arg5[%c0_35, %c0_36] : memref<1x96xf32, #tpu.memory_space<vmem>>, vector<1x96xf32>
    %32 = vector.broadcast %31 : vector<1x96xf32> to vector<6x96xf32>
    %33 = arith.addf %30, %32 : vector<6x96xf32>
    %cst_37 = arith.constant 0.000000e+00 : f32
    %34 = vector.broadcast %cst_37 : f32 to vector<6x96xf32>
    %35 = arith.maximumf %33, %34 : vector<6x96xf32>
    %36 = vector.shape_cast %35 : vector<6x96xf32> to vector<1x6x96xf32>
    %c0_38 = arith.constant 0 : index
    %c0_39 = arith.constant 0 : index
    %c0_40 = arith.constant 0 : index
    %37 = vector.load %arg9[%c0_38, %c0_39, %c0_40] : memref<2x6x96xf32, #tpu.memory_space<vmem>>, vector<1x6x96xf32>
    tpu.vector_store %arg9[%c0_38, %c0_39, %c0_40], %36 {strides = array<i32>} : memref<2x6x96xf32, #tpu.memory_space<vmem>>, vector<1x6x96xf32>,
    %cst_41 = arith.constant 0.000000e+00 : f32
    %38 = vector.broadcast %cst_41 : f32 to vector<6x96xf32>
    %c2_42 = arith.constant 2 : index
    %c0_43 = arith.constant 0 : index
    %c0_44 = arith.constant 0 : index
    %c0_45 = arith.constant 0 : index
    %39 = vector.load %arg1[%c2_42, %c0_43, %c0_44, %c0_45] : memref<4x1x7x28xf32, #tpu.memory_space<vmem>>, vector<1x1x6x28xf32>
    %40 = vector.shape_cast %39 : vector<1x1x6x28xf32> to vector<6x28xf32>
    %c0_46 = arith.constant 0 : index
    %c0_47 = arith.constant 0 : index
    %c0_48 = arith.constant 0 : index
    %41 = vector.load %arg2[%c0_46, %c0_47, %c0_48] : memref<5x28x96xf32, #tpu.memory_space<vmem>>, vector<1x28x96xf32>
    %42 = vector.shape_cast %41 : vector<1x28x96xf32> to vector<28x96xf32>
    %cst_49 = arith.constant dense<0.000000e+00> : vector<6x96xf32>
    %43 = tpu.matmul %40, %42, %cst_49 {dimension_numbers = #tpu.dot_dimension_numbers<[1], [0], [0], [1], [0, 0, 1, 1], [], []>} : vector<6x28xf32>, vector<28x96xf32>, vector<6x96xf32> -> vector<6x96xf32>
    %44 = arith.addf %38, %43 : vector<6x96xf32>
    %c3_50 = arith.constant 3 : index
    %c0_51 = arith.constant 0 : index
    %c0_52 = arith.constant 0 : index
    %c0_53 = arith.constant 0 : index
    %45 = vector.load %arg1[%c3_50, %c0_51, %c0_52, %c0_53] : memref<4x1x7x28xf32, #tpu.memory_space<vmem>>, vector<1x1x6x28xf32>
    %46 = vector.shape_cast %45 : vector<1x1x6x28xf32> to vector<6x28xf32>
    %c1_54 = arith.constant 1 : index
    %c0_55 = arith.constant 0 : index
    %c0_56 = arith.constant 0 : index
    %47 = vector.load %arg2[%c1_54, %c0_55, %c0_56] : memref<5x28x96xf32, #tpu.memory_space<vmem>>, vector<1x28x96xf32>
    %48 = vector.shape_cast %47 : vector<1x28x96xf32> to vector<28x96xf32>
    %cst_57 = arith.constant dense<0.000000e+00> : vector<6x96xf32>
    %49 = tpu.matmul %46, %48, %cst_57 {dimension_numbers = #tpu.dot_dimension_numbers<[1], [0], [0], [1], [0, 0, 1, 1], [], []>} : vector<6x28xf32>, vector<28x96xf32>, vector<6x96xf32> -> vector<6x96xf32>
    %50 = arith.addf %44, %49 : vector<6x96xf32>
    %c0_58 = arith.constant 0 : index
    %c0_59 = arith.constant 0 : index
    %c1_60 = arith.constant 1 : index
    %c0_61 = arith.constant 0 : index
    %51 = vector.load %arg1[%c0_58, %c0_59, %c1_60, %c0_61] : memref<4x1x7x28xf32, #tpu.memory_space<vmem>>, vector<1x1x6x28xf32>
    %52 = vector.shape_cast %51 : vector<1x1x6x28xf32> to vector<6x28xf32>
    %c2_62 = arith.constant 2 : index
    %c0_63 = arith.constant 0 : index
    %c0_64 = arith.constant 0 : index
    %53 = vector.load %arg2[%c2_62, %c0_63, %c0_64] : memref<5x28x96xf32, #tpu.memory_space<vmem>>, vector<1x28x96xf32>
    %54 = vector.shape_cast %53 : vector<1x28x96xf32> to vector<28x96xf32>
    %cst_65 = arith.constant dense<0.000000e+00> : vector<6x96xf32>
    %55 = tpu.matmul %52, %54, %cst_65 {dimension_numbers = #tpu.dot_dimension_numbers<[1], [0], [0], [1], [0, 0, 1, 1], [], []>} : vector<6x28xf32>, vector<28x96xf32>, vector<6x96xf32> -> vector<6x96xf32>
    %56 = arith.addf %50, %55 : vector<6x96xf32>
    %c1_66 = arith.constant 1 : index
    %c0_67 = arith.constant 0 : index
    %c1_68 = arith.constant 1 : index
    %c0_69 = arith.constant 0 : index
    %57 = vector.load %arg1[%c1_66, %c0_67, %c1_68, %c0_69] : memref<4x1x7x28xf32, #tpu.memory_space<vmem>>, vector<1x1x6x28xf32>
    %58 = vector.shape_cast %57 : vector<1x1x6x28xf32> to vector<6x28xf32>
    %c3_70 = arith.constant 3 : index
    %c0_71 = arith.constant 0 : index
    %c0_72 = arith.constant 0 : index
    %59 = vector.load %arg2[%c3_70, %c0_71, %c0_72] : memref<5x28x96xf32, #tpu.memory_space<vmem>>, vector<1x28x96xf32>
    %60 = vector.shape_cast %59 : vector<1x28x96xf32> to vector<28x96xf32>
    %cst_73 = arith.constant dense<0.000000e+00> : vector<6x96xf32>
    %61 = tpu.matmul %58, %60, %cst_73 {dimension_numbers = #tpu.dot_dimension_numbers<[1], [0], [0], [1], [0, 0, 1, 1], [], []>} : vector<6x28xf32>, vector<28x96xf32>, vector<6x96xf32> -> vector<6x96xf32>
    %62 = arith.addf %56, %61 : vector<6x96xf32>
    %c2_74 = arith.constant 2 : index
    %c0_75 = arith.constant 0 : index
    %c1_76 = arith.constant 1 : index
    %c0_77 = arith.constant 0 : index
    %63 = vector.load %arg1[%c2_74, %c0_75, %c1_76, %c0_77] : memref<4x1x7x28xf32, #tpu.memory_space<vmem>>, vector<1x1x6x28xf32>
    %64 = vector.shape_cast %63 : vector<1x1x6x28xf32> to vector<6x28xf32>
    %c4_78 = arith.constant 4 : index
    %c0_79 = arith.constant 0 : index
    %c0_80 = arith.constant 0 : index
    %65 = vector.load %arg2[%c4_78, %c0_79, %c0_80] : memref<5x28x96xf32, #tpu.memory_space<vmem>>, vector<1x28x96xf32>
    %66 = vector.shape_cast %65 : vector<1x28x96xf32> to vector<28x96xf32>
    %cst_81 = arith.constant dense<0.000000e+00> : vector<6x96xf32>
    %67 = tpu.matmul %64, %66, %cst_81 {dimension_numbers = #tpu.dot_dimension_numbers<[1], [0], [0], [1], [0, 0, 1, 1], [], []>} : vector<6x28xf32>, vector<28x96xf32>, vector<6x96xf32> -> vector<6x96xf32>
    %68 = arith.addf %62, %67 : vector<6x96xf32>
    %c0_82 = arith.constant 0 : index
    %c0_83 = arith.constant 0 : index
    %69 = vector.load %arg5[%c0_82, %c0_83] : memref<1x96xf32, #tpu.memory_space<vmem>>, vector<1x96xf32>
    %70 = vector.broadcast %69 : vector<1x96xf32> to vector<6x96xf32>
    %71 = arith.addf %68, %70 : vector<6x96xf32>
    %cst_84 = arith.constant 0.000000e+00 : f32
    %72 = vector.broadcast %cst_84 : f32 to vector<6x96xf32>
    %73 = arith.maximumf %71, %72 : vector<6x96xf32>
    %74 = vector.shape_cast %73 : vector<6x96xf32> to vector<1x6x96xf32>
    %c1_85 = arith.constant 1 : index
    %c0_86 = arith.constant 0 : index
    %c0_87 = arith.constant 0 : index
    %75 = vector.load %arg9[%c1_85, %c0_86, %c0_87] : memref<2x6x96xf32, #tpu.memory_space<vmem>>, vector<1x6x96xf32>
    tpu.vector_store %arg9[%c1_85, %c0_86, %c0_87], %74 {strides = array<i32>} : memref<2x6x96xf32, #tpu.memory_space<vmem>>, vector<1x6x96xf32>,
    %cst_88 = arith.constant 0.000000e+00 : f32
    %76 = vector.broadcast %cst_88 : f32 to vector<5x80xf32>
    %c0_89 = arith.constant 0 : index
    %c0_90 = arith.constant 0 : index
    %c0_91 = arith.constant 0 : index
    %77 = vector.load %arg9[%c0_89, %c0_90, %c0_91] : memref<2x6x96xf32, #tpu.memory_space<vmem>>, vector<1x5x96xf32>
    %78 = vector.shape_cast %77 : vector<1x5x96xf32> to vector<5x96xf32>
    %c0_92 = arith.constant 0 : index
    %c0_93 = arith.constant 0 : index
    %c0_94 = arith.constant 0 : index
    %79 = vector.load %arg3[%c0_92, %c0_93, %c0_94] : memref<3x96x80xf32, #tpu.memory_space<vmem>>, vector<1x96x80xf32>
    %80 = vector.shape_cast %79 : vector<1x96x80xf32> to vector<96x80xf32>
    %cst_95 = arith.constant dense<0.000000e+00> : vector<5x80xf32>
    %81 = tpu.matmul %78, %80, %cst_95 {dimension_numbers = #tpu.dot_dimension_numbers<[1], [0], [0], [1], [0, 0, 1, 1], [], []>} : vector<5x96xf32>, vector<96x80xf32>, vector<5x80xf32> -> vector<5x80xf32>
    %82 = arith.addf %76, %81 : vector<5x80xf32>
    %c1_96 = arith.constant 1 : index
    %c0_97 = arith.constant 0 : index
    %c0_98 = arith.constant 0 : index
    %83 = vector.load %arg9[%c1_96, %c0_97, %c0_98] : memref<2x6x96xf32, #tpu.memory_space<vmem>>, vector<1x5x96xf32>
    %84 = vector.shape_cast %83 : vector<1x5x96xf32> to vector<5x96xf32>
    %c1_99 = arith.constant 1 : index
    %c0_100 = arith.constant 0 : index
    %c0_101 = arith.constant 0 : index
    %85 = vector.load %arg3[%c1_99, %c0_100, %c0_101] : memref<3x96x80xf32, #tpu.memory_space<vmem>>, vector<1x96x80xf32>
    %86 = vector.shape_cast %85 : vector<1x96x80xf32> to vector<96x80xf32>
    %cst_102 = arith.constant dense<0.000000e+00> : vector<5x80xf32>
    %87 = tpu.matmul %84, %86, %cst_102 {dimension_numbers = #tpu.dot_dimension_numbers<[1], [0], [0], [1], [0, 0, 1, 1], [], []>} : vector<5x96xf32>, vector<96x80xf32>, vector<5x80xf32> -> vector<5x80xf32>
    %88 = arith.addf %82, %87 : vector<5x80xf32>
    %c0_103 = arith.constant 0 : index
    %c1_104 = arith.constant 1 : index
    %c0_105 = arith.constant 0 : index
    %89 = vector.load %arg9[%c0_103, %c1_104, %c0_105] : memref<2x6x96xf32, #tpu.memory_space<vmem>>, vector<1x5x96xf32>
    %90 = vector.shape_cast %89 : vector<1x5x96xf32> to vector<5x96xf32>
    %c2_106 = arith.constant 2 : index
    %c0_107 = arith.constant 0 : index
    %c0_108 = arith.constant 0 : index
    %91 = vector.load %arg3[%c2_106, %c0_107, %c0_108] : memref<3x96x80xf32, #tpu.memory_space<vmem>>, vector<1x96x80xf32>
    %92 = vector.shape_cast %91 : vector<1x96x80xf32> to vector<96x80xf32>
    %cst_109 = arith.constant dense<0.000000e+00> : vector<5x80xf32>
    %93 = tpu.matmul %90, %92, %cst_109 {dimension_numbers = #tpu.dot_dimension_numbers<[1], [0], [0], [1], [0, 0, 1, 1], [], []>} : vector<5x96xf32>, vector<96x80xf32>, vector<5x80xf32> -> vector<5x80xf32>
    %94 = arith.addf %88, %93 : vector<5x80xf32>
    %c0_110 = arith.constant 0 : index
    %c0_111 = arith.constant 0 : index
    %95 = vector.load %arg6[%c0_110, %c0_111] : memref<1x80xf32, #tpu.memory_space<vmem>>, vector<1x80xf32>
    %96 = vector.broadcast %95 : vector<1x80xf32> to vector<5x80xf32>
    %97 = arith.addf %94, %96 : vector<5x80xf32>
    %cst_112 = arith.constant 0.000000e+00 : f32
    %98 = vector.broadcast %cst_112 : f32 to vector<5x80xf32>
    %99 = arith.maximumf %97, %98 : vector<5x80xf32>
    %c0_113 = arith.constant 0 : index
    %c0_114 = arith.constant 0 : index
    %100 = vector.load %arg10[%c0_113, %c0_114] : memref<5x80xf32, #tpu.memory_space<vmem>>, vector<5x80xf32>
    tpu.vector_store %arg10[%c0_113, %c0_114], %99 {strides = array<i32>} : memref<5x80xf32, #tpu.memory_space<vmem>>, vector<5x80xf32>,
    %cst_115 = arith.constant 0.000000e+00 : f32
    %101 = vector.broadcast %cst_115 : f32 to vector<1x64xf32>
    %c0_116 = arith.constant 0 : index
    %c0_117 = arith.constant 0 : index
    %102 = vector.load %arg10[%c0_116, %c0_117] : memref<5x80xf32, #tpu.memory_space<vmem>>, vector<1x80xf32>
    %c0_118 = arith.constant 0 : index
    %c0_119 = arith.constant 0 : index
    %c0_120 = arith.constant 0 : index
    %103 = vector.load %arg4[%c0_118, %c0_119, %c0_120] : memref<3x80x64xf32, #tpu.memory_space<vmem>>, vector<1x80x64xf32>
    %104 = vector.shape_cast %103 : vector<1x80x64xf32> to vector<80x64xf32>
    %cst_121 = arith.constant dense<0.000000e+00> : vector<1x64xf32>
    %105 = tpu.matmul %102, %104, %cst_121 {dimension_numbers = #tpu.dot_dimension_numbers<[1], [0], [0], [1], [0, 0, 1, 1], [], []>} : vector<1x80xf32>, vector<80x64xf32>, vector<1x64xf32> -> vector<1x64xf32>
    %106 = arith.addf %101, %105 : vector<1x64xf32>
    %c1_122 = arith.constant 1 : index
    %c0_123 = arith.constant 0 : index
    %107 = vector.load %arg10[%c1_122, %c0_123] : memref<5x80xf32, #tpu.memory_space<vmem>>, vector<1x80xf32>
    %c1_124 = arith.constant 1 : index
    %c0_125 = arith.constant 0 : index
    %c0_126 = arith.constant 0 : index
    %108 = vector.load %arg4[%c1_124, %c0_125, %c0_126] : memref<3x80x64xf32, #tpu.memory_space<vmem>>, vector<1x80x64xf32>
    %109 = vector.shape_cast %108 : vector<1x80x64xf32> to vector<80x64xf32>
    %cst_127 = arith.constant dense<0.000000e+00> : vector<1x64xf32>
    %110 = tpu.matmul %107, %109, %cst_127 {dimension_numbers = #tpu.dot_dimension_numbers<[1], [0], [0], [1], [0, 0, 1, 1], [], []>} : vector<1x80xf32>, vector<80x64xf32>, vector<1x64xf32> -> vector<1x64xf32>
    %111 = arith.addf %106, %110 : vector<1x64xf32>
    %c2_128 = arith.constant 2 : index
    %c0_129 = arith.constant 0 : index
    %112 = vector.load %arg10[%c2_128, %c0_129] : memref<5x80xf32, #tpu.memory_space<vmem>>, vector<1x80xf32>
    %c2_130 = arith.constant 2 : index
    %c0_131 = arith.constant 0 : index
    %c0_132 = arith.constant 0 : index
    %113 = vector.load %arg4[%c2_130, %c0_131, %c0_132] : memref<3x80x64xf32, #tpu.memory_space<vmem>>, vector<1x80x64xf32>
    %114 = vector.shape_cast %113 : vector<1x80x64xf32> to vector<80x64xf32>
    %cst_133 = arith.constant dense<0.000000e+00> : vector<1x64xf32>
    %115 = tpu.matmul %112, %114, %cst_133 {dimension_numbers = #tpu.dot_dimension_numbers<[1], [0], [0], [1], [0, 0, 1, 1], [], []>} : vector<1x80xf32>, vector<80x64xf32>, vector<1x64xf32> -> vector<1x64xf32>
    %116 = arith.addf %111, %115 : vector<1x64xf32>
    %c0_134 = arith.constant 0 : index
    %c0_135 = arith.constant 0 : index
    %117 = vector.load %arg7[%c0_134, %c0_135] : memref<1x64xf32, #tpu.memory_space<vmem>>, vector<1x64xf32>
    %118 = arith.addf %116, %117 : vector<1x64xf32>
    %cst_136 = arith.constant 0.000000e+00 : f32
    %119 = vector.broadcast %cst_136 : f32 to vector<1x64xf32>
    %120 = arith.maximumf %118, %119 : vector<1x64xf32>
    %121 = vector.shape_cast %120 : vector<1x64xf32> to vector<1x1x64xf32>
    %c0_137 = arith.constant 0 : index
    %c0_138 = arith.constant 0 : index
    %c0_139 = arith.constant 0 : index
    %122 = vector.load %arg8[%c0_137, %c0_138, %c0_139] : memref<1x2x64xf32, #tpu.memory_space<vmem>>, vector<1x1x64xf32>
    tpu.vector_store %arg8[%c0_137, %c0_138, %c0_139], %121 {strides = array<i32>} : memref<1x2x64xf32, #tpu.memory_space<vmem>>, vector<1x1x64xf32>,
    %cst_140 = arith.constant 0.000000e+00 : f32
    %123 = vector.broadcast %cst_140 : f32 to vector<1x64xf32>
    %c2_141 = arith.constant 2 : index
    %c0_142 = arith.constant 0 : index
    %124 = vector.load %arg10[%c2_141, %c0_142] : memref<5x80xf32, #tpu.memory_space<vmem>>, vector<1x80xf32>
    %c0_143 = arith.constant 0 : index
    %c0_144 = arith.constant 0 : index
    %c0_145 = arith.constant 0 : index
    %125 = vector.load %arg4[%c0_143, %c0_144, %c0_145] : memref<3x80x64xf32, #tpu.memory_space<vmem>>, vector<1x80x64xf32>
    %126 = vector.shape_cast %125 : vector<1x80x64xf32> to vector<80x64xf32>
    %cst_146 = arith.constant dense<0.000000e+00> : vector<1x64xf32>
    %127 = tpu.matmul %124, %126, %cst_146 {dimension_numbers = #tpu.dot_dimension_numbers<[1], [0], [0], [1], [0, 0, 1, 1], [], []>} : vector<1x80xf32>, vector<80x64xf32>, vector<1x64xf32> -> vector<1x64xf32>
    %128 = arith.addf %123, %127 : vector<1x64xf32>
    %c3_147 = arith.constant 3 : index
    %c0_148 = arith.constant 0 : index
    %129 = vector.load %arg10[%c3_147, %c0_148] : memref<5x80xf32, #tpu.memory_space<vmem>>, vector<1x80xf32>
    %c1_149 = arith.constant 1 : index
    %c0_150 = arith.constant 0 : index
    %c0_151 = arith.constant 0 : index
    %130 = vector.load %arg4[%c1_149, %c0_150, %c0_151] : memref<3x80x64xf32, #tpu.memory_space<vmem>>, vector<1x80x64xf32>
    %131 = vector.shape_cast %130 : vector<1x80x64xf32> to vector<80x64xf32>
    %cst_152 = arith.constant dense<0.000000e+00> : vector<1x64xf32>
    %132 = tpu.matmul %129, %131, %cst_152 {dimension_numbers = #tpu.dot_dimension_numbers<[1], [0], [0], [1], [0, 0, 1, 1], [], []>} : vector<1x80xf32>, vector<80x64xf32>, vector<1x64xf32> -> vector<1x64xf32>
    %133 = arith.addf %128, %132 : vector<1x64xf32>
    %c4_153 = arith.constant 4 : index
    %c0_154 = arith.constant 0 : index
    %134 = vector.load %arg10[%c4_153, %c0_154] : memref<5x80xf32, #tpu.memory_space<vmem>>, vector<1x80xf32>
    %c2_155 = arith.constant 2 : index
    %c0_156 = arith.constant 0 : index
    %c0_157 = arith.constant 0 : index
    %135 = vector.load %arg4[%c2_155, %c0_156, %c0_157] : memref<3x80x64xf32, #tpu.memory_space<vmem>>, vector<1x80x64xf32>
    %136 = vector.shape_cast %135 : vector<1x80x64xf32> to vector<80x64xf32>
    %cst_158 = arith.constant dense<0.000000e+00> : vector<1x64xf32>
    %137 = tpu.matmul %134, %136, %cst_158 {dimension_numbers = #tpu.dot_dimension_numbers<[1], [0], [0], [1], [0, 0, 1, 1], [], []>} : vector<1x80xf32>, vector<80x64xf32>, vector<1x64xf32> -> vector<1x64xf32>
    %138 = arith.addf %133, %137 : vector<1x64xf32>
    %c0_159 = arith.constant 0 : index
    %c0_160 = arith.constant 0 : index
    %139 = vector.load %arg7[%c0_159, %c0_160] : memref<1x64xf32, #tpu.memory_space<vmem>>, vector<1x64xf32>
    %140 = arith.addf %138, %139 : vector<1x64xf32>
    %cst_161 = arith.constant 0.000000e+00 : f32
    %141 = vector.broadcast %cst_161 : f32 to vector<1x64xf32>
    %142 = arith.maximumf %140, %141 : vector<1x64xf32>
    %143 = vector.shape_cast %142 : vector<1x64xf32> to vector<1x1x64xf32>
    %c0_162 = arith.constant 0 : index
    %c1_163 = arith.constant 1 : index
    %c0_164 = arith.constant 0 : index
    %144 = vector.load %arg8[%c0_162, %c1_163, %c0_164] : memref<1x2x64xf32, #tpu.memory_space<vmem>>, vector<1x1x64xf32>
    tpu.vector_store %arg8[%c0_162, %c1_163, %c0_164], %143 {strides = array<i32>} : memref<1x2x64xf32, #tpu.memory_space<vmem>>, vector<1x1x64xf32>,
    return
  }
  func.func @transform_0(%arg0: i32) -> (i32, i32, i32, i32) {
    %c0_i32 = arith.constant 0 : i32
    %c0_i32_0 = arith.constant 0 : i32
    %c0_i32_1 = arith.constant 0 : i32
    %c0_i32_2 = arith.constant 0 : i32
    return %c0_i32, %arg0, %c0_i32_0, %c0_i32_1 : i32, i32, i32, i32
  }
  func.func @transform_1(%arg0: i32) -> (i32, i32, i32) {
    %c0_i32 = arith.constant 0 : i32
    %c0_i32_0 = arith.constant 0 : i32
    %c0_i32_1 = arith.constant 0 : i32
    %c0_i32_2 = arith.constant 0 : i32
    return %c0_i32, %c0_i32_0, %c0_i32_1 : i32, i32, i32
  }
  func.func @transform_2(%arg0: i32) -> (i32, i32, i32) {
    %c0_i32 = arith.constant 0 : i32
    %c0_i32_0 = arith.constant 0 : i32
    %c0_i32_1 = arith.constant 0 : i32
    %c0_i32_2 = arith.constant 0 : i32
    return %c0_i32, %c0_i32_0, %c0_i32_1 : i32, i32, i32
  }
  func.func @transform_3(%arg0: i32) -> (i32, i32, i32) {
    %c0_i32 = arith.constant 0 : i32
    %c0_i32_0 = arith.constant 0 : i32
    %c0_i32_1 = arith.constant 0 : i32
    %c0_i32_2 = arith.constant 0 : i32
    return %c0_i32, %c0_i32_0, %c0_i32_1 : i32, i32, i32
  }
  func.func @transform_4(%arg0: i32) -> (i32, i32) {
    %c0_i32 = arith.constant 0 : i32
    %c0_i32_0 = arith.constant 0 : i32
    %c0_i32_1 = arith.constant 0 : i32
    return %c0_i32, %c0_i32_0 : i32, i32
  }
  func.func @transform_5(%arg0: i32) -> (i32, i32) {
    %c0_i32 = arith.constant 0 : i32
    %c0_i32_0 = arith.constant 0 : i32
    %c0_i32_1 = arith.constant 0 : i32
    return %c0_i32, %c0_i32_0 : i32, i32
  }
  func.func @transform_6(%arg0: i32) -> (i32, i32) {
    %c0_i32 = arith.constant 0 : i32
    %c0_i32_0 = arith.constant 0 : i32
    %c0_i32_1 = arith.constant 0 : i32
    return %c0_i32, %c0_i32_0 : i32, i32
  }
  func.func @transform_7(%arg0: i32) -> (i32, i32, i32) {
    %c0_i32 = arith.constant 0 : i32
    %c0_i32_0 = arith.constant 0 : i32
    %c0_i32_1 = arith.constant 0 : i32
    return %arg0, %c0_i32, %c0_i32_0 : i32, i32, i32
  }
}

</mosaic_0001>

<llo_original>
// kernel: tile.18
$region0: #{tile.18}
  #allocation0 [shape = 's32[1]{0}', space=sflag, size = 0x4, scoped, tag = 'scoped memory for tile.18']
  %s0 = inlined_call_operand.vmem [shape: f32[8], index: 0, kind: input, shape index: {}]
  %s1 = inlined_call_operand.vmem [shape: f32[12,8], index: 1, kind: output, shape index: {}]
  // Predicated region
  $region2: #{tile.18} parent=0 // pred_check
    _
  $region3: #{tile.18} parent=0 // pred_check_branch
    %3 = sbr.rel (0) target = $region5
  $region4: #{tile.18} parent=0 // pred_region
    _
  $region5: #{tile.18} parent=0 // pred_fallthru
    _
  %v4 = vld [vmem:[%s0] ss:$0 sm:$0xff]
  %5 = vst [vmem:[%s1] sm:$0xff] %v4
  %s6 = scalar_lea.vmem %s1, 8
  %7 = vst [vmem:[%s6] sm:$0xff] %v4

// kernel: tile.19
$region0: #{tile.19}
  %s0 = inlined_call_operand.vmem [shape: f32[12,8], index: 0, kind: input, shape index: {}]
  %s1 = inlined_call_operand.vmem [shape: f32[1,96], index: 1, kind: output, shape index: {}]
  $region1: #{tile.19} parent=0
    #allocation0 [shape = 'u8[4096]{0}', space=vmem, size = 0x1000, scoped, tag = 'scoped mem for output reshape']
    %v2 = vld [vmem:[%s0] sm:$0x1]
    %vm3 = vcmask 64512
    %4 = vst.msk [vmem:[#allocation0] sm:$0x1] %vm3, %v2
    %s5 = scalar_lea.vmem %s0, 11
    %v6 = vld [vmem:[%s5] sm:$0x1]
    %7 = vrot.lane.b32.xlu0 %v6, 88
    %v8 = vpop.permute.xlu0 %7
    %vm9 = vcmask 786112
    %10 = vst.msk [vmem:[#allocation0] sm:$0x1] %vm9, %v8
    %s11 = scalar_lea.vmem %s0, 10
    %v12 = vld [vmem:[%s11] sm:$0x1]
    %13 = vrot.lane.b32.xlu0 %v12, 80
    %v14 = vpop.permute.xlu0 %13
    %vm15 = vcmask 720512
    %16 = vst.msk [vmem:[#allocation0] sm:$0x1] %vm15, %v14
    %s17 = scalar_lea.vmem %s0, 9
    %v18 = vld [vmem:[%s17] sm:$0x1]
    %19 = vrot.lane.b32.xlu0 %v18, 72
    %v20 = vpop.permute.xlu0 %19
    %vm21 = vcmask 654912
    %22 = vst.msk [vmem:[#allocation0] sm:$0x1] %vm21, %v20
    %s23 = scalar_lea.vmem %s0, 8
    %v24 = vld [vmem:[%s23] sm:$0x1]
    %25 = vrot.lane.b32.xlu0 %v24, 64
    %v26 = vpop.permute.xlu0 %25
    %vm27 = vcmask 589312
    %28 = vst.msk [vmem:[#allocation0] sm:$0x1] %vm27, %v26
    %s29 = scalar_lea.vmem %s0, 7
    %v30 = vld [vmem:[%s29] sm:$0x1]
    %31 = vrot.lane.b32.xlu0 %v30, 56
    %v32 = vpop.permute.xlu0 %31
    %vm33 = vcmask 523712
    %34 = vst.msk [vmem:[#allocation0] sm:$0x1] %vm33, %v32
    %s35 = scalar_lea.vmem %s0, 6
    %v36 = vld [vmem:[%s35] sm:$0x1]
    %37 = vrot.lane.b32.xlu0 %v36, 48
    %v38 = vpop.permute.xlu0 %37
    %vm39 = vcmask 458112
    %40 = vst.msk [vmem:[#allocation0] sm:$0x1] %vm39, %v38
    %s41 = scalar_lea.vmem %s0, 5
    %v42 = vld [vmem:[%s41] sm:$0x1]
    %43 = vrot.lane.b32.xlu0 %v42, 40
    %v44 = vpop.permute.xlu0 %43
    %vm45 = vcmask 392512
    %46 = vst.msk [vmem:[#allocation0] sm:$0x1] %vm45, %v44
    %s47 = scalar_lea.vmem %s0, 4
    %v48 = vld [vmem:[%s47] sm:$0x1]
    %49 = vrot.lane.b32.xlu0 %v48, 32
    %v50 = vpop.permute.xlu0 %49
    %vm51 = vcmask 326912
    %52 = vst.msk [vmem:[#allocation0] sm:$0x1] %vm51, %v50
    %s53 = scalar_lea.vmem %s0, 3
    %v54 = vld [vmem:[%s53] sm:$0x1]
    %55 = vrot.lane.b32.xlu0 %v54, 24
    %v56 = vpop.permute.xlu0 %55
    %vm57 = vcmask 261312
    %58 = vst.msk [vmem:[#allocation0] sm:$0x1] %vm57, %v56
    %s59 = scalar_lea.vmem %s0, 2
    %v60 = vld [vmem:[%s59] sm:$0x1]
    %61 = vrot.lane.b32.xlu0 %v60, 16
    %v62 = vpop.permute.xlu0 %61
    %vm63 = vcmask 195712
    %64 = vst.msk [vmem:[#allocation0] sm:$0x1] %vm63, %v62
    %s65 = scalar_lea.vmem %s0, 1
    %v66 = vld [vmem:[%s65] sm:$0x1]
    %67 = vrot.lane.b32.xlu0 %v66, 8
    %v68 = vpop.permute.xlu0 %67
    %vm69 = vcmask 130112
    %70 = vst.msk [vmem:[#allocation0] sm:$0x1] %vm69, %v68
    %s72 = sshllo.u32 0, 1
    %v74 = vld [vmem:[#allocation0] sm:%s72]
    %s75 = sshllo.u32 0, 1
    %76 = vst [vmem:[%s1] sm:%s75] %v74

// kernel: tile.23
$region0: #{tile.23}
  #allocation0 [shape = 's32[1]{0}', space=sflag, size = 0x4, scoped, tag = 'scoped memory for tile.23']
  %s0 = inlined_call_operand.vmem [shape: f32[16], index: 0, kind: input, shape index: {}]
  %s1 = inlined_call_operand.vmem [shape: f32[5,16], index: 1, kind: output, shape index: {}]
  // Predicated region
  $region2: #{tile.23} parent=0 // pred_check
    _
  $region3: #{tile.23} parent=0 // pred_check_branch
    %3 = sbr.rel (0) target = $region5
  $region4: #{tile.23} parent=0 // pred_region
    _
  $region5: #{tile.23} parent=0 // pred_fallthru
    _
  %v4 = vld [vmem:[%s0] ss:$0 sm:$0xff]
  %5 = vst [vmem:[%s1] sm:$0xff] %v4

// kernel: tile.24
$region0: #{tile.24}
  %s0 = inlined_call_operand.vmem [shape: f32[5,16], index: 0, kind: input, shape index: {}]
  %s1 = inlined_call_operand.vmem [shape: f32[1,80], index: 1, kind: output, shape index: {}]
  $region1: #{tile.24} parent=0
    #allocation0 [shape = 'u8[4096]{0}', space=vmem, size = 0x1000, scoped, tag = 'scoped mem for output reshape']
    %v2 = vld [vmem:[%s0] sm:$0x1]
    %vm3 = vcmask 130048
    %4 = vst.msk [vmem:[#allocation0] sm:$0x1] %vm3, %v2
    %s5 = scalar_lea.vmem %s0, 4
    %v6 = vld [vmem:[%s5] sm:$0x1]
    %7 = vrot.lane.b32.xlu0 %v6, 64
    %v8 = vpop.permute.xlu0 %7
    %vm9 = vcmask 654848
    %10 = vst.msk [vmem:[#allocation0] sm:$0x1] %vm9, %v8
    %s11 = scalar_lea.vmem %s0, 3
    %v12 = vld [vmem:[%s11] sm:$0x1]
    %13 = vrot.lane.b32.xlu0 %v12, 48
    %v14 = vpop.permute.xlu0 %13
    %vm15 = vcmask 523648
    %16 = vst.msk [vmem:[#allocation0] sm:$0x1] %vm15, %v14
    %s17 = scalar_lea.vmem %s0, 2
    %v18 = vld [vmem:[%s17] sm:$0x1]
    %19 = vrot.lane.b32.xlu0 %v18, 32
    %v20 = vpop.permute.xlu0 %19
    %vm21 = vcmask 392448
    %22 = vst.msk [vmem:[#allocation0] sm:$0x1] %vm21, %v20
    %s23 = scalar_lea.vmem %s0, 1
    %v24 = vld [vmem:[%s23] sm:$0x1]
    %25 = vrot.lane.b32.xlu0 %v24, 16
    %v26 = vpop.permute.xlu0 %25
    %vm27 = vcmask 261248
    %28 = vst.msk [vmem:[#allocation0] sm:$0x1] %vm27, %v26
    %s30 = sshllo.u32 0, 1
    %v32 = vld [vmem:[#allocation0] sm:%s30]
    %s33 = sshllo.u32 0, 1
    %34 = vst [vmem:[%s1] sm:%s33] %v32

// kernel: tile.28
$region0: #{tile.28}
  #allocation0 [shape = 's32[1]{0}', space=sflag, size = 0x4, scoped, tag = 'scoped memory for tile.28']
  %s0 = inlined_call_operand.vmem [shape: f32[32], index: 0, kind: input, shape index: {}]
  %s1 = inlined_call_operand.vmem [shape: f32[2,32], index: 1, kind: output, shape index: {}]
  // Predicated region
  $region2: #{tile.28} parent=0 // pred_check
    _
  $region3: #{tile.28} parent=0 // pred_check_branch
    %3 = sbr.rel (0) target = $region5
  $region4: #{tile.28} parent=0 // pred_region
    _
  $region5: #{tile.28} parent=0 // pred_fallthru
    _
  %v4 = vld [vmem:[%s0] ss:$0 sm:$0xff]
  %5 = vst [vmem:[%s1] sm:$0x3] %v4

// kernel: tile.29
$region0: #{tile.29}
  %s0 = inlined_call_operand.vmem [shape: f32[2,32], index: 0, kind: input, shape index: {}]
  %s1 = inlined_call_operand.vmem [shape: f32[1,64], index: 1, kind: output, shape index: {}]
  $region1: #{tile.29} parent=0
    #allocation0 [shape = 'u8[4096]{0}', space=vmem, size = 0x1000, scoped, tag = 'scoped mem for output reshape']
    #allocation1 [shape = 'u8[4096]{0}', space=vmem, size = 0x1000, scoped, tag = 'scoped mem for input reshape']
    %s3 = sshllo.u32 0, 2
    %v4 = vld [vmem:[%s0] sm:%s3]
    %5 = vst [vmem:[#allocation1] sm:%s3] %v4
    %v6 = vld [vmem:[#allocation1] sm:$0x1]
    %vm7 = vcmask 261120
    %8 = vst.msk [vmem:[#allocation0] sm:$0x1] %vm7, %v6
    %s9 = scalar_lea.vmem [#allocation1], 1
    %v10 = vld [vmem:[%s9] sm:$0x1]
    %11 = vrot.lane.b32.xlu0 %v10, 32
    %v12 = vpop.permute.xlu0 %11
    %vm13 = vcmask 523520
    %14 = vst.msk [vmem:[#allocation0] sm:$0x1] %vm13, %v12
    %s16 = sshllo.u32 0, 1
    %v18 = vld [vmem:[#allocation0] sm:%s16]
    %s19 = sshllo.u32 0, 1
    %20 = vst [vmem:[%s1] sm:%s19] %v18

// kernel: encoder_forward.1
$region0: #{encoder_forward.1}
  #allocation0 [shape = 'u32[]', space=smem, size = 0x4, offset = 0x4, fixed_abs, tag = 'smem constant byte address 0x4 - core index']
  #allocation1 [shape = 'u32[144,128]{1,0:T(1,128)}', space=vmem, size = 0x12000, scoped, tag = 'internal scratch']
  #allocation2 [shape = 'f32[2,6,96]{2,1,0:T(8,128)}', space=vmem, size = 0x2000, scoped, tag = 'scratch operand']
  #allocation3 [shape = 'f32[5,80]{1,0:T(8,128)}', space=vmem, size = 0x1000, scoped, tag = 'scratch operand']
  %s0 = inlined_call_operand.vmem [shape: f32[4,2,7,28], index: 0, kind: input, shape index: {}]
  %s1 = inlined_call_operand.vmem [shape: f32[5,28,96], index: 1, kind: input, shape index: {}]
  %s2 = inlined_call_operand.vmem [shape: f32[3,96,80], index: 2, kind: input, shape index: {}]
  %s3 = inlined_call_operand.vmem [shape: f32[3,80,64], index: 3, kind: input, shape index: {}]
  %s4 = inlined_call_operand.vmem [shape: f32[1,96], index: 4, kind: input, shape index: {}]
  %s5 = inlined_call_operand.vmem [shape: f32[1,80], index: 5, kind: input, shape index: {}]
  %s6 = inlined_call_operand.vmem [shape: f32[1,64], index: 6, kind: input, shape index: {}]
  %s7 = inlined_call_operand.vmem [shape: f32[2,2,64], index: 7, kind: output, shape index: {}]
  %s8 = sld [smem:[#allocation0]]
  $region99: #{encoder_forward.1} parent=0
    _
  %s10 = ssub.s32 1, %s8
  %s11 = scalar_select 0, %s10, %s8
  $region1: #{encoder_forward.1} parent=0
    #allocation4 [shape = 'u8[32768]{0}', space=vmem, size = 0x8000, scoped, tag = 'input window, operand 0']
    loop: start=0, step=1, limit=4
    $region2: #{encoder_forward.1} parent=1 // loop_pre_header
      _
    $region3: #{encoder_forward.1} parent=1 // loop_header
      %s13 = sphi 0, %s17
      %p14 = scmp.ge.s32.totalorder %s13, 4
      %s23 = sphi 0, %s25
      %s26 = sphi 0, %s23
      %s27 = sphi 0, %s26
      %s43 = sphi 0, %s27
      %s47 = sphi 0, %s47
      %s49 = sphi 0, %s47
      %s50 = sphi 0, %s49
      %s64 = sphi 0, %s50
      %s68 = sphi 0, %s68
      %s70 = sphi 0, %s68
      %s71 = sphi 0, %s70
      %s85 = sphi 0, %s71
      %s89 = sphi 0, %s89
      %s91 = sphi 0, %s89
      %s92 = sphi 0, %s91
      %s106 = sphi 0, %s92
      %s110 = sphi 0, %s110
      %s112 = sphi 0, %s110
      %s113 = sphi 0, %s112
      %s127 = sphi 0, %s113
      %s131 = sphi 0, %s131
      %s133 = sphi 0, %s131
      %s134 = sphi 0, %s133
      %s148 = sphi 0, %s134
      %s152 = sphi 0, %s152
      %s154 = sphi 0, %s152
      %s155 = sphi 0, %s154
      %s169 = sphi 0, %s155
      %s175 = sphi 0, %s177
      %s178 = sphi 0, %s175
      %s179 = sphi 0, %s178
      %s195 = sphi 0, %s179
    $region4: #{encoder_forward.1} parent=1 // loop_header_branch
      %16 = sbr.rel (%p14) target = $region8
    $region5: #{encoder_forward.1} parent=1 // loop_body
      %s18 = ssub.s32 %s13, 1
      %s19 = ssub.s32 %s13, 2
      %s20 = sadd.s32 %s13, 1
      %s21 = ssub.s32 %s13, %s20
      %p22 = scmp.eq.s32.totalorder %s21, 0
      %s24 = sadd.s32 %s23, 1
      %s25 = scalar_select %p22, %s23, %s24
      %p28 = pneg %p22
      %p29 = scmp.eq.s32.totalorder %s13, 1
      %p30 = por %p28, %p29
      %p31 = scmp.ne.s32.totalorder %s23, %s26
      %p32 = scmp.eq.s32.totalorder %s13, 0
      %p33 = por %p31, %p32
      %p34 = scmp.ne.s32.totalorder %s23, %s26
      %p35 = scmp.eq.s32.totalorder %s18, 1
      %p36 = por %p34, %p35
      %p37 = scmp.ne.s32.totalorder %s26, %s27
      %p38 = scmp.eq.s32.totalorder %s18, 0
      %p39 = por %p37, %p38
      %p40 = scmp.ne.s32.totalorder %s26, %s27
      %p41 = scmp.eq.s32.totalorder %s19, 1
      %p42 = por %p40, %p41
      %p44 = scmp.ne.s32.totalorder %s27, %s43
      %p45 = scmp.eq.s32.totalorder %s19, 0
      %p46 = por %p44, %p45
      %s48 = sadd.s32 %s47, 1
      %p51 = scmp.eq.s32.totalorder %s13, 1
      %p52 = scmp.ne.s32.totalorder %s47, %s49
      %p53 = scmp.eq.s32.totalorder %s13, 0
      %p54 = por %p52, %p53
      %p55 = scmp.ne.s32.totalorder %s47, %s49
      %p56 = scmp.eq.s32.totalorder %s18, 1
      %p57 = por %p55, %p56
      %p58 = scmp.ne.s32.totalorder %s49, %s50
      %p59 = scmp.eq.s32.totalorder %s18, 0
      %p60 = por %p58, %p59
      %p61 = scmp.ne.s32.totalorder %s49, %s50
      %p62 = scmp.eq.s32.totalorder %s19, 1
      %p63 = por %p61, %p62
      %p65 = scmp.ne.s32.totalorder %s50, %s64
      %p66 = scmp.eq.s32.totalorder %s19, 0
      %p67 = por %p65, %p66
      %s69 = sadd.s32 %s68, 1
      %p72 = scmp.eq.s32.totalorder %s13, 1
      %p73 = scmp.ne.s32.totalorder %s68, %s70
      %p74 = scmp.eq.s32.totalorder %s13, 0
      %p75 = por %p73, %p74
      %p76 = scmp.ne.s32.totalorder %s68, %s70
      %p77 = scmp.eq.s32.totalorder %s18, 1
      %p78 = por %p76, %p77
      %p79 = scmp.ne.s32.totalorder %s70, %s71
      %p80 = scmp.eq.s32.totalorder %s18, 0
      %p81 = por %p79, %p80
      %p82 = scmp.ne.s32.totalorder %s70, %s71
      %p83 = scmp.eq.s32.totalorder %s19, 1
      %p84 = por %p82, %p83
      %p86 = scmp.ne.s32.totalorder %s71, %s85
      %p87 = scmp.eq.s32.totalorder %s19, 0
      %p88 = por %p86, %p87
      %s90 = sadd.s32 %s89, 1
      %p93 = scmp.eq.s32.totalorder %s13, 1
      %p94 = scmp.ne.s32.totalorder %s89, %s91
      %p95 = scmp.eq.s32.totalorder %s13, 0
      %p96 = por %p94, %p95
      %p97 = scmp.ne.s32.totalorder %s89, %s91
      %p98 = scmp.eq.s32.totalorder %s18, 1
      %p99 = por %p97, %p98
      %p100 = scmp.ne.s32.totalorder %s91, %s92
      %p101 = scmp.eq.s32.totalorder %s18, 0
      %p102 = por %p100, %p101
      %p103 = scmp.ne.s32.totalorder %s91, %s92
      %p104 = scmp.eq.s32.totalorder %s19, 1
      %p105 = por %p103, %p104
      %p107 = scmp.ne.s32.totalorder %s92, %s106
      %p108 = scmp.eq.s32.totalorder %s19, 0
      %p109 = por %p107, %p108
      %s111 = sadd.s32 %s110, 1
      %p114 = scmp.eq.s32.totalorder %s13, 1
      %p115 = scmp.ne.s32.totalorder %s110, %s112
      %p116 = scmp.eq.s32.totalorder %s13, 0
      %p117 = por %p115, %p116
      %p118 = scmp.ne.s32.totalorder %s110, %s112
      %p119 = scmp.eq.s32.totalorder %s18, 1
      %p120 = por %p118, %p119
      %p121 = scmp.ne.s32.totalorder %s112, %s113
      %p122 = scmp.eq.s32.totalorder %s18, 0
      %p123 = por %p121, %p122
      %p124 = scmp.ne.s32.totalorder %s112, %s113
      %p125 = scmp.eq.s32.totalorder %s19, 1
      %p126 = por %p124, %p125
      %p128 = scmp.ne.s32.totalorder %s113, %s127
      %p129 = scmp.eq.s32.totalorder %s19, 0
      %p130 = por %p128, %p129
      %s132 = sadd.s32 %s131, 1
      %p135 = scmp.eq.s32.totalorder %s13, 1
      %p136 = scmp.ne.s32.totalorder %s131, %s133
      %p137 = scmp.eq.s32.totalorder %s13, 0
      %p138 = por %p136, %p137
      %p139 = scmp.ne.s32.totalorder %s131, %s133
      %p140 = scmp.eq.s32.totalorder %s18, 1
      %p141 = por %p139, %p140
      %p142 = scmp.ne.s32.totalorder %s133, %s134
      %p143 = scmp.eq.s32.totalorder %s18, 0
      %p144 = por %p142, %p143
      %p145 = scmp.ne.s32.totalorder %s133, %s134
      %p146 = scmp.eq.s32.totalorder %s19, 1
      %p147 = por %p145, %p146
      %p149 = scmp.ne.s32.totalorder %s134, %s148
      %p150 = scmp.eq.s32.totalorder %s19, 0
      %p151 = por %p149, %p150
      %s153 = sadd.s32 %s152, 1
      %p156 = scmp.eq.s32.totalorder %s13, 1
      %p157 = scmp.ne.s32.totalorder %s152, %s154
      %p158 = scmp.eq.s32.totalorder %s13, 0
      %p159 = por %p157, %p158
      %p160 = scmp.ne.s32.totalorder %s152, %s154
      %p161 = scmp.eq.s32.totalorder %s18, 1
      %p162 = por %p160, %p161
      %p163 = scmp.ne.s32.totalorder %s154, %s155
      %p164 = scmp.eq.s32.totalorder %s18, 0
      %p165 = por %p163, %p164
      %p166 = scmp.ne.s32.totalorder %s154, %s155
      %p167 = scmp.eq.s32.totalorder %s19, 1
      %p168 = por %p166, %p167
      %p170 = scmp.ne.s32.totalorder %s155, %s169
      %p171 = scmp.eq.s32.totalorder %s19, 0
      %p172 = por %p170, %p171
      %s173 = ssub.s32 %s13, %s20
      %p174 = scmp.eq.s32.totalorder %s173, 0
      %s176 = sadd.s32 %s175, 1
      %s177 = scalar_select %p174, %s175, %s176
      %p180 = pneg %p174
      %p181 = scmp.eq.s32.totalorder %s13, 1
      %p182 = por %p180, %p181
      %p183 = scmp.ne.s32.totalorder %s175, %s178
      %p184 = scmp.eq.s32.totalorder %s13, 0
      %p185 = por %p183, %p184
      %p186 = scmp.ne.s32.totalorder %s175, %s178
      %p187 = scmp.eq.s32.totalorder %s18, 1
      %p188 = por %p186, %p187
      %p189 = scmp.ne.s32.totalorder %s178, %s179
      %p190 = scmp.eq.s32.totalorder %s18, 0
      %p191 = por %p189, %p190
      %p192 = scmp.ne.s32.totalorder %s178, %s179
      %p193 = scmp.eq.s32.totalorder %s19, 1
      %p194 = por %p192, %p193
      %p196 = scmp.ne.s32.totalorder %s179, %s195
      %p197 = scmp.eq.s32.totalorder %s19, 0
      %p198 = por %p196, %p197
      %p199 = scmp.le.s32.totalorder 1, %s13
      %p200 = scmp.lt.s32.totalorder %s13, 3
      %p201 = pnand %p199, %p200
      %p202 = pneg %p201
      // Predicated region
      $region9: #{encoder_forward.1} parent=5 // pred_check
        _
      $region10: #{encoder_forward.1} parent=5 // pred_check_branch
        %204 = sbr.rel (%p201) target = $region12
      $region11: #{encoder_forward.1} parent=5 // pred_region
        %s205 = ssub.s32 %s13, 1
        // Predicated region
        $region13: #{encoder_forward.1} parent=11 // pred_check
          %p206 = pneg %p60
        $region14: #{encoder_forward.1} parent=11 // pred_check_branch
          %208 = sbr.rel (%p206) target = $region16
        $region15: #{encoder_forward.1} parent=11 // pred_region
          _
        $region16: #{encoder_forward.1} parent=11 // pred_fallthru
          _
        // Predicated region
        $region17: #{encoder_forward.1} parent=11 // pred_check
          %p209 = pneg %p81
        $region18: #{encoder_forward.1} parent=11 // pred_check_branch
          %211 = sbr.rel (%p209) target = $region20
        $region19: #{encoder_forward.1} parent=11 // pred_region
          _
        $region20: #{encoder_forward.1} parent=11 // pred_fallthru
          _
        // Predicated region
        $region21: #{encoder_forward.1} parent=11 // pred_check
          %p212 = pneg %p102
        $region22: #{encoder_forward.1} parent=11 // pred_check_branch
          %214 = sbr.rel (%p212) target = $region24
        $region23: #{encoder_forward.1} parent=11 // pred_region
          _
        $region24: #{encoder_forward.1} parent=11 // pred_fallthru
          _
        // Predicated region
        $region25: #{encoder_forward.1} parent=11 // pred_check
          %p215 = pneg %p123
        $region26: #{encoder_forward.1} parent=11 // pred_check_branch
          %217 = sbr.rel (%p215) target = $region28
        $region27: #{encoder_forward.1} parent=11 // pred_region
          _
        $region28: #{encoder_forward.1} parent=11 // pred_fallthru
          _
        // Predicated region
        $region29: #{encoder_forward.1} parent=11 // pred_check
          %p218 = pneg %p144
        $region30: #{encoder_forward.1} parent=11 // pred_check_branch
          %220 = sbr.rel (%p218) target = $region32
        $region31: #{encoder_forward.1} parent=11 // pred_region
          _
        $region32: #{encoder_forward.1} parent=11 // pred_fallthru
          _
        // Predicated region
        $region33: #{encoder_forward.1} parent=11 // pred_check
          %p221 = pneg %p165
        $region34: #{encoder_forward.1} parent=11 // pred_check_branch
          %223 = sbr.rel (%p221) target = $region36
        $region35: #{encoder_forward.1} parent=11 // pred_region
          _
        $region36: #{encoder_forward.1} parent=11 // pred_fallthru
          _
      $region12: #{encoder_forward.1} parent=5 // pred_fallthru
        _
      %p224 = scmp.lt.s32.totalorder %s13, 2
      // Predicated region
      $region37: #{encoder_forward.1} parent=5 // pred_check
        %p225 = pneg %p224
      $region38: #{encoder_forward.1} parent=5 // pred_check_branch
        %227 = sbr.rel (%p225) target = $region40
      $region39: #{encoder_forward.1} parent=5 // pred_region
        // Predicated region
        $region41: #{encoder_forward.1} parent=39 // pred_check
          %p228 = pneg %p33
        $region42: #{encoder_forward.1} parent=39 // pred_check_branch
          %230 = sbr.rel (%p228) target = $region44
        $region43: #{encoder_forward.1} parent=39 // pred_region
          %s231 = sand.u32 %s23, 1
          %s232 = sand.u32 %s23, 1
          %s233 = smul.addr %s232, 32
          %s234 = scalar_lea.vmem [#allocation4], %s233
          %s235 = smul.addr %s13, 8
          %s236 = scalar_lea.vmem %s0, %s235
          // Predicated region
          $region45: #{encoder_forward.1} parent=43 // pred_check
            _
          $region46: #{encoder_forward.1} parent=43 // pred_check_branch
            %238 = sbr.rel (0) target = $region48
          $region47: #{encoder_forward.1} parent=43 // pred_region
            // Predicated region
            $region49: #{encoder_forward.1} parent=47 // pred_check
              _
            $region50: #{encoder_forward.1} parent=47 // pred_check_branch
              %240 = sbr.rel (0) target = $region52
            $region51: #{encoder_forward.1} parent=47 // pred_region
              // Predicated region
              $region64: #{encoder_forward.1} parent=51 // pred_check
                _
              $region65: #{encoder_forward.1} parent=51 // pred_check_branch
                %261 = sbr.rel (0) target = $region67
              $region66: #{encoder_forward.1} parent=51 // pred_region
                loop: start=0, step=1, limit=1
                $region68: #{encoder_forward.1} parent=66 // loop_pre_header
                  _
                $region69: #{encoder_forward.1} parent=66 // loop_header
                  %s263 = sphi 0, %s267
                  %p264 = scmp.ge.s32.totalorder %s263, 1
                  %s268 = sphi %s236, %s236
                  %s269 = sphi %s234, %s234
                $region70: #{encoder_forward.1} parent=66 // loop_header_branch
                  %266 = sbr.rel (%p264) target = $region74
                $region71: #{encoder_forward.1} parent=66 // loop_body
                  %v270 = vld [vmem:[%s268] sm:$0xff]
                  %271 = vst [vmem:[%s269] sm:$0xff] %v270
                  %v272 = vld [vmem:[%s268 + $0x10] sm:$0xff]
                  %273 = vst [vmem:[%s269 + $0x8] sm:$0xff] %v272
                  %v274 = vld [vmem:[%s268 + $0x20] sm:$0xff]
                  %275 = vst [vmem:[%s269 + $0x10] sm:$0xff] %v274
                  %v276 = vld [vmem:[%s268 + $0x30] sm:$0xff]
                  %277 = vst [vmem:[%s269 + $0x18] sm:$0xff] %v276
                $region72: #{encoder_forward.1} parent=66 // loop_footer
                  %s267 = sadd.s32 1, %s263
                $region73: #{encoder_forward.1} parent=66 // loop_footer_branch
                  %262 = sbr.rel target = $region69
                $region74: #{encoder_forward.1} parent=66 // loop_exit
                  _
              $region67: #{encoder_forward.1} parent=51 // pred_fallthru
                _
              // Predicated region
              $region75: #{encoder_forward.1} parent=51 // pred_check
                _
              $region76: #{encoder_forward.1} parent=51 // pred_check_branch
                %279 = sbr.rel target = $region78
              $region77: #{encoder_forward.1} parent=51 // pred_region
                _
              $region78: #{encoder_forward.1} parent=51 // pred_fallthru
                _
            $region52: #{encoder_forward.1} parent=47 // pred_fallthru
              _
            // Predicated region
            $region53: #{encoder_forward.1} parent=47 // pred_check
              _
            $region54: #{encoder_forward.1} parent=47 // pred_check_branch
              %242 = sbr.rel target = $region56
            $region55: #{encoder_forward.1} parent=47 // pred_region
              loop: start=0, step=1, limit=1
              $region57: #{encoder_forward.1} parent=55 // loop_pre_header
                _
              $region58: #{encoder_forward.1} parent=55 // loop_header
                %s245 = sphi 0, %s249
                %p246 = scmp.ge.s32.totalorder %s245, 1
                %s250 = sphi %s236, %s236
                %s251 = sphi %s234, %s234
              $region59: #{encoder_forward.1} parent=55 // loop_header_branch
                %248 = sbr.rel (%p246) target = $region63
              $region60: #{encoder_forward.1} parent=55 // loop_body
                %v252 = vld [vmem:[%s250] sm:$0xff]
                %253 = vst [vmem:[%s251] sm:$0xff] %v252
                %v254 = vld [vmem:[%s250 + $0x10] sm:$0xff]
                %255 = vst [vmem:[%s251 + $0x8] sm:$0xff] %v254
                %v256 = vld [vmem:[%s250 + $0x20] sm:$0xff]
                %257 = vst [vmem:[%s251 + $0x10] sm:$0xff] %v256
                %v258 = vld [vmem:[%s250 + $0x30] sm:$0xff]
                %259 = vst [vmem:[%s251 + $0x18] sm:$0xff] %v258
              $region61: #{encoder_forward.1} parent=55 // loop_footer
                %s249 = sadd.s32 1, %s245
              $region62: #{encoder_forward.1} parent=55 // loop_footer_branch
                %244 = sbr.rel target = $region58
              $region63: #{encoder_forward.1} parent=55 // loop_exit
                _
            $region56: #{encoder_forward.1} parent=47 // pred_fallthru
              _
          $region48: #{encoder_forward.1} parent=43 // pred_fallthru
            _
          %280 = vnop
        $region44: #{encoder_forward.1} parent=39 // pred_fallthru
          _
      $region40: #{encoder_forward.1} parent=5 // pred_fallthru
        _
      %p281 = scmp.le.s32.totalorder 1, %s13
      %p282 = scmp.lt.s32.totalorder %s13, 3
      %p283 = pnand %p281, %p282
      %p284 = pneg %p283
      // Predicated region
      $region79: #{encoder_forward.1} parent=5 // pred_check
        _
      $region80: #{encoder_forward.1} parent=5 // pred_check_branch
        %286 = sbr.rel (%p283) target = $region82
      $region81: #{encoder_forward.1} parent=5 // pred_region
        %s287 = ssub.s32 %s13, 1
        %s288 = sand.u32 %s26, 1
        %s289 = sand.u32 %s26, 1
        %s290 = smul.addr %s289, 32
        %s291 = scalar_lea.vmem [#allocation4], %s290
        // Predicated region
        $region83: #{encoder_forward.1} parent=81 // pred_check
          %p292 = pneg %p39
        $region84: #{encoder_forward.1} parent=81 // pred_check_branch
          %294 = sbr.rel (%p292) target = $region86
        $region85: #{encoder_forward.1} parent=81 // pred_region
          _
        $region86: #{encoder_forward.1} parent=81 // pred_fallthru
          _
        %s295 = sand.u32 %s26, 1
        %s296 = sand.u32 %s26, 1
        %s297 = smul.addr %s296, 32
        %s298 = scalar_lea.vmem [#allocation4], %s297
        %p299 = pneg %p39
        %p300 = pneg %p36
        %p301 = pneg %p60
        %p302 = pneg %p57
        %p303 = pneg %p81
        %p304 = pneg %p78
        %p305 = pneg %p102
        %p306 = pneg %p99
        %p307 = pneg %p123
        %p308 = pneg %p120
        %p309 = pneg %p144
        %p310 = pneg %p141
        %p311 = pneg %p165
        %p312 = pneg %p162
        %p313 = pneg %p191
        %p314 = pneg %p188
        %p315 = scmp.lt.s32.totalorder %s18, 1
        %s316 = scalar_select %p315, %s18, 1
        %s317 = smul.addr %s316, 2
        %s318 = scalar_lea.vmem %s7, %s317
        %p319 = scmp.lt.s32.totalorder %s18, 1
        %s320 = scalar_select %p319, %s18, 1
        %s321 = smul.addr %s320, 2
        %s322 = scalar_lea.vmem %s7, %s321
        %v323 = vld [vmem:[%s291] sm:$0x3f]
        %v324 = vld [vmem:[%s1] sm:$0xff]
        %v325 = vld [vmem:[%s1 + $0x8] sm:$0xff]
        %v326 = vld [vmem:[%s1 + $0x10] sm:$0xff]
        %v327 = vld [vmem:[%s1 + $0x18] sm:$0xf]
        %s328 = scalar_lea.vmem %s291, 8 [#allocation4]
        %v329 = vld [vmem:[%s328] sm:$0x3f]
        %s330 = scalar_lea.vmem %s1, 32
        %v331 = vld [vmem:[%s330] sm:$0xff]
        %v332 = vld [vmem:[%s330 + $0x8] sm:$0xff]
        %v333 = vld [vmem:[%s330 + $0x10] sm:$0xff]
        %v334 = vld [vmem:[%s330 + $0x18] sm:$0xf]
        %vm335 = vcmask 228352
        %v337 = vsel %vm335, %v329, 0
        %vm339 = vcmask 1043456
        %v341 = vsel %vm339, %v334, 0
        %343 = vmatprep.subr.mxu0 0.0
        %344 = vmatpush1.msra.mxu0 %v331
        %345 = vmatprep.subr.mxu0 0.0
        %346 = vmatpush1.msra.mxu0 %v332
        %347 = vmatprep.subr.mxu0 0.0
        %348 = vmatpush1.msra.mxu0 %v333
        %349 = vmatprep.subr.mxu0 0.0
        %350 = vmatpush1.msra.mxu0 %v341
        %351 = vmatprep.subr.mxu0 0.0
        %352 = vmatpush1.msra.mxu0 0.0
        %353 = vmatprep.subr.mxu0 0.0
        %354 = vmatpush1.msra.mxu0 0.0
        %355 = vmatprep.subr.mxu0 0.0
        %356 = vmatpush1.msra.mxu0 0.0
        %357 = vmatprep.subr.mxu0 0.0
        %358 = vmatpush1.msra.mxu0 0.0
        %359 = vmatprep.subr.mxu0 0.0
        %360 = vmatpush1.msra.mxu0 0.0
        %361 = vmatprep.subr.mxu0 0.0
        %362 = vmatpush1.msra.mxu0 0.0
        %363 = vmatprep.subr.mxu0 0.0
        %364 = vmatpush1.msra.mxu0 0.0
        %365 = vmatprep.subr.mxu0 0.0
        %366 = vmatpush1.msra.mxu0 0.0
        %367 = vmatprep.subr.mxu0 0.0
        %368 = vmatpush1.msra.mxu0 0.0
        %369 = vmatprep.subr.mxu0 0.0
        %370 = vmatpush1.msra.mxu0 0.0
        %371 = vmatprep.subr.mxu0 0.0
        %372 = vmatpush1.msra.mxu0 0.0
        %373 = vmatprep.subr.mxu0 0.0
        %374 = vmatpush1.msra.mxu0 0.0
        %375 = vmatprep.subr.mxu0 0.0
        %376 = vmatpush1.msra.mxu0 0.0
        %377 = vmatprep.subr.mxu0 0.0
        %378 = vmatpush1.msra.mxu0 0.0
        %379 = vmatprep.subr.mxu0 0.0
        %380 = vmatpush1.msra.mxu0 0.0
        %381 = vmatprep.subr.mxu0 0.0
        %382 = vmatpush1.msra.mxu0 0.0
        %383 = vmatprep.subr.mxu0 0.0
        %384 = vmatpush1.msra.mxu0 0.0
        %385 = vmatprep.subr.mxu0 0.0
        %386 = vmatpush1.msra.mxu0 0.0
        %387 = vmatprep.subr.mxu0 0.0
        %388 = vmatpush1.msra.mxu0 0.0
        %389 = vmatprep.subr.mxu0 0.0
        %390 = vmatpush1.msra.mxu0 0.0
        %391 = vmatprep.subr.mxu0 0.0
        %392 = vmatpush1.msra.mxu0 0.0
        %393 = vmatprep.subr.mxu0 0.0
        %394 = vmatpush1.msra.mxu0 0.0
        %395 = vmatprep.subr.mxu0 0.0
        %396 = vmatpush1.msra.mxu0 0.0
        %397 = vmatprep.subr.mxu0 0.0
        %398 = vmatpush1.msra.mxu0 0.0
        %399 = vmatprep.subr.mxu0 0.0
        %400 = vmatpush1.msra.mxu0 0.0
        %401 = vmatprep.subr.mxu0 0.0
        %402 = vmatpush1.msra.mxu0 0.0
        %403 = vmatprep.subr.mxu0 0.0
        %404 = vmatpush1.msra.mxu0 0.0
        %405 = vmatprep.subr.mxu0 0.0
        %406 = vmatpush1.msra.mxu0 0.0
        %407 = vmatprep.mubr.f32.mxu0 0.0
        %408 = vmatmul.mubr.f32.gmra.mrb[0].mxu0 %v337
        %v409 = vpop.f32.mrb[0].mxu0
        %v410 = vadd.f32 0.0, %v409
        %v411 = vpop.f32.mrb[0].mxu0
        %412 = vdwg.mxu0
        %v414 = vsel %vm335, %v323, 0
        %v417 = vsel %vm339, %v327, 0
        %419 = vmatprep.subr.mxu0 0.0
        %420 = vmatpush1.msra.mxu0 %v324
        %421 = vmatprep.subr.mxu0 0.0
        %422 = vmatpush1.msra.mxu0 %v325
        %423 = vmatprep.subr.mxu0 0.0
        %424 = vmatpush1.msra.mxu0 %v326
        %425 = vmatprep.subr.mxu0 0.0
        %426 = vmatpush1.msra.mxu0 %v417
        %427 = vmatprep.subr.mxu0 0.0
        %428 = vmatpush1.msra.mxu0 0.0
        %429 = vmatprep.subr.mxu0 0.0
        %430 = vmatpush1.msra.mxu0 0.0
        %431 = vmatprep.subr.mxu0 0.0
        %432 = vmatpush1.msra.mxu0 0.0
        %433 = vmatprep.subr.mxu0 0.0
        %434 = vmatpush1.msra.mxu0 0.0
        %435 = vmatprep.subr.mxu0 0.0
        %436 = vmatpush1.msra.mxu0 0.0
        %437 = vmatprep.subr.mxu0 0.0
        %438 = vmatpush1.msra.mxu0 0.0
        %439 = vmatprep.subr.mxu0 0.0
        %440 = vmatpush1.msra.mxu0 0.0
        %441 = vmatprep.subr.mxu0 0.0
        %442 = vmatpush1.msra.mxu0 0.0
        %443 = vmatprep.subr.mxu0 0.0
        %444 = vmatpush1.msra.mxu0 0.0
        %445 = vmatprep.subr.mxu0 0.0
        %446 = vmatpush1.msra.mxu0 0.0
        %447 = vmatprep.subr.mxu0 0.0
        %448 = vmatpush1.msra.mxu0 0.0
        %449 = vmatprep.subr.mxu0 0.0
        %450 = vmatpush1.msra.mxu0 0.0
        %451 = vmatprep.subr.mxu0 0.0
        %452 = vmatpush1.msra.mxu0 0.0
        %453 = vmatprep.subr.mxu0 0.0
        %454 = vmatpush1.msra.mxu0 0.0
        %455 = vmatprep.subr.mxu0 0.0
        %456 = vmatpush1.msra.mxu0 0.0
        %457 = vmatprep.subr.mxu0 0.0
        %458 = vmatpush1.msra.mxu0 0.0
        %459 = vmatprep.subr.mxu0 0.0
        %460 = vmatpush1.msra.mxu0 0.0
        %461 = vmatprep.subr.mxu0 0.0
        %462 = vmatpush1.msra.mxu0 0.0
        %463 = vmatprep.subr.mxu0 0.0
        %464 = vmatpush1.msra.mxu0 0.0
        %465 = vmatprep.subr.mxu0 0.0
        %466 = vmatpush1.msra.mxu0 0.0
        %467 = vmatprep.subr.mxu0 0.0
        %468 = vmatpush1.msra.mxu0 0.0
        %469 = vmatprep.subr.mxu0 0.0
        %470 = vmatpush1.msra.mxu0 0.0
        %471 = vmatprep.subr.mxu0 0.0
        %472 = vmatpush1.msra.mxu0 0.0
        %473 = vmatprep.subr.mxu0 0.0
        %474 = vmatpush1.msra.mxu0 0.0
        %475 = vmatprep.subr.mxu0 0.0
        %476 = vmatpush1.msra.mxu0 0.0
        %477 = vmatprep.subr.mxu0 0.0
        %478 = vmatpush1.msra.mxu0 0.0
        %479 = vmatprep.subr.mxu0 0.0
        %480 = vmatpush1.msra.mxu0 0.0
        %481 = vmatprep.subr.mxu0 0.0
        %482 = vmatpush1.msra.mxu0 0.0
        %483 = vmatprep.mubr.f32.mxu0 0.0
        %484 = vmatmul.mubr.f32.gmra.mrb[0].mxu0 %v414
        %v485 = vpop.f32.mrb[0].mxu0
        %v486 = vadd.f32 %v410, %v485
        %v487 = vpop.f32.mrb[0].mxu0
        %488 = vdwg.mxu0
        %s489 = scalar_lea.vmem %s291, 16 [#allocation4]
        %v490 = vld [vmem:[%s489] sm:$0x3f]
        %s491 = scalar_lea.vmem %s1, 64
        %v492 = vld [vmem:[%s491] sm:$0xff]
        %v493 = vld [vmem:[%s491 + $0x8] sm:$0xff]
        %v494 = vld [vmem:[%s491 + $0x10] sm:$0xff]
        %v495 = vld [vmem:[%s491 + $0x18] sm:$0xf]
        %v497 = vsel %vm335, %v490, 0
        %v500 = vsel %vm339, %v495, 0
        %502 = vmatprep.subr.mxu0 0.0
        %503 = vmatpush1.msra.mxu0 %v492
        %504 = vmatprep.subr.mxu0 0.0
        %505 = vmatpush1.msra.mxu0 %v493
        %506 = vmatprep.subr.mxu0 0.0
        %507 = vmatpush1.msra.mxu0 %v494
        %508 = vmatprep.subr.mxu0 0.0
        %509 = vmatpush1.msra.mxu0 %v500
        %510 = vmatprep.subr.mxu0 0.0
        %511 = vmatpush1.msra.mxu0 0.0
        %512 = vmatprep.subr.mxu0 0.0
        %513 = vmatpush1.msra.mxu0 0.0
        %514 = vmatprep.subr.mxu0 0.0
        %515 = vmatpush1.msra.mxu0 0.0
        %516 = vmatprep.subr.mxu0 0.0
        %517 = vmatpush1.msra.mxu0 0.0
        %518 = vmatprep.subr.mxu0 0.0
        %519 = vmatpush1.msra.mxu0 0.0
        %520 = vmatprep.subr.mxu0 0.0
        %521 = vmatpush1.msra.mxu0 0.0
        %522 = vmatprep.subr.mxu0 0.0
        %523 = vmatpush1.msra.mxu0 0.0
        %524 = vmatprep.subr.mxu0 0.0
        %525 = vmatpush1.msra.mxu0 0.0
        %526 = vmatprep.subr.mxu0 0.0
        %527 = vmatpush1.msra.mxu0 0.0
        %528 = vmatprep.subr.mxu0 0.0
        %529 = vmatpush1.msra.mxu0 0.0
        %530 = vmatprep.subr.mxu0 0.0
        %531 = vmatpush1.msra.mxu0 0.0
        %532 = vmatprep.subr.mxu0 0.0
        %533 = vmatpush1.msra.mxu0 0.0
        %534 = vmatprep.subr.mxu0 0.0
        %535 = vmatpush1.msra.mxu0 0.0
        %536 = vmatprep.subr.mxu0 0.0
        %537 = vmatpush1.msra.mxu0 0.0
        %538 = vmatprep.subr.mxu0 0.0
        %539 = vmatpush1.msra.mxu0 0.0
        %540 = vmatprep.subr.mxu0 0.0
        %541 = vmatpush1.msra.mxu0 0.0
        %542 = vmatprep.subr.mxu0 0.0
        %543 = vmatpush1.msra.mxu0 0.0
        %544 = vmatprep.subr.mxu0 0.0
        %545 = vmatpush1.msra.mxu0 0.0
        %546 = vmatprep.subr.mxu0 0.0
        %547 = vmatpush1.msra.mxu0 0.0
        %548 = vmatprep.subr.mxu0 0.0
        %549 = vmatpush1.msra.mxu0 0.0
        %550 = vmatprep.subr.mxu0 0.0
        %551 = vmatpush1.msra.mxu0 0.0
        %552 = vmatprep.subr.mxu0 0.0
        %553 = vmatpush1.msra.mxu0 0.0
        %554 = vmatprep.subr.mxu0 0.0
        %555 = vmatpush1.msra.mxu0 0.0
        %556 = vmatprep.subr.mxu0 0.0
        %557 = vmatpush1.msra.mxu0 0.0
        %558 = vmatprep.subr.mxu0 0.0
        %559 = vmatpush1.msra.mxu0 0.0
        %560 = vmatprep.subr.mxu0 0.0
        %561 = vmatpush1.msra.mxu0 0.0
        %562 = vmatprep.subr.mxu0 0.0
        %563 = vmatpush1.msra.mxu0 0.0
        %564 = vmatprep.subr.mxu0 0.0
        %565 = vmatpush1.msra.mxu0 0.0
        %566 = vmatprep.mubr.f32.mxu0 0.0
        %567 = vmatmul.mubr.f32.gmra.mrb[0].mxu0 %v497
        %v568 = vpop.f32.mrb[0].mxu0
        %v569 = vadd.f32 0.0, %v568
        %v570 = vpop.f32.mrb[0].mxu0
        %571 = vdwg.mxu0
        %v572 = vadd.f32 %v486, %v569
        %s573 = scalar_lea.vmem %s291, 24 [#allocation4]
        %v574 = vld [vmem:[%s573] sm:$0x3f]
        %s575 = scalar_lea.vmem %s1, 96
        %v576 = vld [vmem:[%s575] sm:$0xff]
        %v577 = vld [vmem:[%s575 + $0x8] sm:$0xff]
        %v578 = vld [vmem:[%s575 + $0x10] sm:$0xff]
        %v579 = vld [vmem:[%s575 + $0x18] sm:$0xf]
        %v581 = vsel %vm335, %v574, 0
        %v584 = vsel %vm339, %v579, 0
        %586 = vmatprep.subr.mxu0 0.0
        %587 = vmatpush1.msra.mxu0 %v576
        %588 = vmatprep.subr.mxu0 0.0
        %589 = vmatpush1.msra.mxu0 %v577
        %590 = vmatprep.subr.mxu0 0.0
        %591 = vmatpush1.msra.mxu0 %v578
        %592 = vmatprep.subr.mxu0 0.0
        %593 = vmatpush1.msra.mxu0 %v584
        %594 = vmatprep.subr.mxu0 0.0
        %595 = vmatpush1.msra.mxu0 0.0
        %596 = vmatprep.subr.mxu0 0.0
        %597 = vmatpush1.msra.mxu0 0.0
        %598 = vmatprep.subr.mxu0 0.0
        %599 = vmatpush1.msra.mxu0 0.0
        %600 = vmatprep.subr.mxu0 0.0
        %601 = vmatpush1.msra.mxu0 0.0
        %602 = vmatprep.subr.mxu0 0.0
        %603 = vmatpush1.msra.mxu0 0.0
        %604 = vmatprep.subr.mxu0 0.0
        %605 = vmatpush1.msra.mxu0 0.0
        %606 = vmatprep.subr.mxu0 0.0
        %607 = vmatpush1.msra.mxu0 0.0
        %608 = vmatprep.subr.mxu0 0.0
        %609 = vmatpush1.msra.mxu0 0.0
        %610 = vmatprep.subr.mxu0 0.0
        %611 = vmatpush1.msra.mxu0 0.0
        %612 = vmatprep.subr.mxu0 0.0
        %613 = vmatpush1.msra.mxu0 0.0
        %614 = vmatprep.subr.mxu0 0.0
        %615 = vmatpush1.msra.mxu0 0.0
        %616 = vmatprep.subr.mxu0 0.0
        %617 = vmatpush1.msra.mxu0 0.0
        %618 = vmatprep.subr.mxu0 0.0
        %619 = vmatpush1.msra.mxu0 0.0
        %620 = vmatprep.subr.mxu0 0.0
        %621 = vmatpush1.msra.mxu0 0.0
        %622 = vmatprep.subr.mxu0 0.0
        %623 = vmatpush1.msra.mxu0 0.0
        %624 = vmatprep.subr.mxu0 0.0
        %625 = vmatpush1.msra.mxu0 0.0
        %626 = vmatprep.subr.mxu0 0.0
        %627 = vmatpush1.msra.mxu0 0.0
        %628 = vmatprep.subr.mxu0 0.0
        %629 = vmatpush1.msra.mxu0 0.0
        %630 = vmatprep.subr.mxu0 0.0
        %631 = vmatpush1.msra.mxu0 0.0
        %632 = vmatprep.subr.mxu0 0.0
        %633 = vmatpush1.msra.mxu0 0.0
        %634 = vmatprep.subr.mxu0 0.0
        %635 = vmatpush1.msra.mxu0 0.0
        %636 = vmatprep.subr.mxu0 0.0
        %637 = vmatpush1.msra.mxu0 0.0
        %638 = vmatprep.subr.mxu0 0.0
        %639 = vmatpush1.msra.mxu0 0.0
        %640 = vmatprep.subr.mxu0 0.0
        %641 = vmatpush1.msra.mxu0 0.0
        %642 = vmatprep.subr.mxu0 0.0
        %643 = vmatpush1.msra.mxu0 0.0
        %644 = vmatprep.subr.mxu0 0.0
        %645 = vmatpush1.msra.mxu0 0.0
        %646 = vmatprep.subr.mxu0 0.0
        %647 = vmatpush1.msra.mxu0 0.0
        %648 = vmatprep.subr.mxu0 0.0
        %649 = vmatpush1.msra.mxu0 0.0
        %650 = vmatprep.mubr.f32.mxu0 0.0
        %651 = vmatmul.mubr.f32.gmra.mrb[0].mxu0 %v581
        %v652 = vpop.f32.mrb[0].mxu0
        %v653 = vadd.f32 0.0, %v652
        %v654 = vpop.f32.mrb[0].mxu0
        %655 = vdwg.mxu0
        %v656 = vadd.f32 %v572, %v653
        %v657 = vld [vmem:[%s291 + $0x1] sm:$0x3f]
        %s658 = scalar_lea.vmem %s1, 128
        %v659 = vld [vmem:[%s658] sm:$0xff]
        %v660 = vld [vmem:[%s658 + $0x8] sm:$0xff]
        %v661 = vld [vmem:[%s658 + $0x10] sm:$0xff]
        %v662 = vld [vmem:[%s658 + $0x18] sm:$0xf]
        %v664 = vsel %vm335, %v657, 0
        %v667 = vsel %vm339, %v662, 0
        %669 = vmatprep.subr.mxu0 0.0
        %670 = vmatpush1.msra.mxu0 %v659
        %671 = vmatprep.subr.mxu0 0.0
        %672 = vmatpush1.msra.mxu0 %v660
        %673 = vmatprep.subr.mxu0 0.0
        %674 = vmatpush1.msra.mxu0 %v661
        %675 = vmatprep.subr.mxu0 0.0
        %676 = vmatpush1.msra.mxu0 %v667
        %677 = vmatprep.subr.mxu0 0.0
        %678 = vmatpush1.msra.mxu0 0.0
        %679 = vmatprep.subr.mxu0 0.0
        %680 = vmatpush1.msra.mxu0 0.0
        %681 = vmatprep.subr.mxu0 0.0
        %682 = vmatpush1.msra.mxu0 0.0
        %683 = vmatprep.subr.mxu0 0.0
        %684 = vmatpush1.msra.mxu0 0.0
        %685 = vmatprep.subr.mxu0 0.0
        %686 = vmatpush1.msra.mxu0 0.0
        %687 = vmatprep.subr.mxu0 0.0
        %688 = vmatpush1.msra.mxu0 0.0
        %689 = vmatprep.subr.mxu0 0.0
        %690 = vmatpush1.msra.mxu0 0.0
        %691 = vmatprep.subr.mxu0 0.0
        %692 = vmatpush1.msra.mxu0 0.0
        %693 = vmatprep.subr.mxu0 0.0
        %694 = vmatpush1.msra.mxu0 0.0
        %695 = vmatprep.subr.mxu0 0.0
        %696 = vmatpush1.msra.mxu0 0.0
        %697 = vmatprep.subr.mxu0 0.0
        %698 = vmatpush1.msra.mxu0 0.0
        %699 = vmatprep.subr.mxu0 0.0
        %700 = vmatpush1.msra.mxu0 0.0
        %701 = vmatprep.subr.mxu0 0.0
        %702 = vmatpush1.msra.mxu0 0.0
        %703 = vmatprep.subr.mxu0 0.0
        %704 = vmatpush1.msra.mxu0 0.0
        %705 = vmatprep.subr.mxu0 0.0
        %706 = vmatpush1.msra.mxu0 0.0
        %707 = vmatprep.subr.mxu0 0.0
        %708 = vmatpush1.msra.mxu0 0.0
        %709 = vmatprep.subr.mxu0 0.0
        %710 = vmatpush1.msra.mxu0 0.0
        %711 = vmatprep.subr.mxu0 0.0
        %712 = vmatpush1.msra.mxu0 0.0
        %713 = vmatprep.subr.mxu0 0.0
        %714 = vmatpush1.msra.mxu0 0.0
        %715 = vmatprep.subr.mxu0 0.0
        %716 = vmatpush1.msra.mxu0 0.0
        %717 = vmatprep.subr.mxu0 0.0
        %718 = vmatpush1.msra.mxu0 0.0
        %719 = vmatprep.subr.mxu0 0.0
        %720 = vmatpush1.msra.mxu0 0.0
        %721 = vmatprep.subr.mxu0 0.0
        %722 = vmatpush1.msra.mxu0 0.0
        %723 = vmatprep.subr.mxu0 0.0
        %724 = vmatpush1.msra.mxu0 0.0
        %725 = vmatprep.subr.mxu0 0.0
        %726 = vmatpush1.msra.mxu0 0.0
        %727 = vmatprep.subr.mxu0 0.0
        %728 = vmatpush1.msra.mxu0 0.0
        %729 = vmatprep.subr.mxu0 0.0
        %730 = vmatpush1.msra.mxu0 0.0
        %731 = vmatprep.subr.mxu0 0.0
        %732 = vmatpush1.msra.mxu0 0.0
        %733 = vmatprep.mubr.f32.mxu0 0.0
        %734 = vmatmul.mubr.f32.gmra.mrb[0].mxu0 %v664
        %v735 = vpop.f32.mrb[0].mxu0
        %v736 = vadd.f32 0.0, %v735
        %v737 = vpop.f32.mrb[0].mxu0
        %738 = vdwg.mxu0
        %v739 = vadd.f32 %v656, %v736
        %v740 = vld [vmem:[%s4] sm:$0x1]
        %v742 = vlaneseq
        %v743 = vshrl.u32 %v742, 7
        %v744 = vsub.s32 0, %v743
        %v745 = vrot.slane %v740, %v744
        %v747 = vadd.f32 %v739, %v745
        %v748 = vmax.f32 %v747, 0.0
        %vm749 = vcmask 783360
        %750 = vst.msk [vmem:[#allocation2] sm:$0x3f] %vm749, %v748
        %v751 = vld [vmem:[%s489] sm:$0x3f]
        %v752 = vld [vmem:[%s1] sm:$0xff]
        %v753 = vld [vmem:[%s1 + $0x8] sm:$0xff]
        %v754 = vld [vmem:[%s1 + $0x10] sm:$0xff]
        %v755 = vld [vmem:[%s1 + $0x18] sm:$0xf]
        %v756 = vld [vmem:[%s573] sm:$0x3f]
        %v757 = vld [vmem:[%s330] sm:$0xff]
        %v758 = vld [vmem:[%s330 + $0x8] sm:$0xff]
        %v759 = vld [vmem:[%s330 + $0x10] sm:$0xff]
        %v760 = vld [vmem:[%s330 + $0x18] sm:$0xf]
        %v762 = vsel %vm335, %v756, 0
        %v765 = vsel %vm339, %v760, 0
        %767 = vmatprep.subr.mxu0 0.0
        %768 = vmatpush1.msra.mxu0 %v757
        %769 = vmatprep.subr.mxu0 0.0
        %770 = vmatpush1.msra.mxu0 %v758
        %771 = vmatprep.subr.mxu0 0.0
        %772 = vmatpush1.msra.mxu0 %v759
        %773 = vmatprep.subr.mxu0 0.0
        %774 = vmatpush1.msra.mxu0 %v765
        %775 = vmatprep.subr.mxu0 0.0
        %776 = vmatpush1.msra.mxu0 0.0
        %777 = vmatprep.subr.mxu0 0.0
        %778 = vmatpush1.msra.mxu0 0.0
        %779 = vmatprep.subr.mxu0 0.0
        %780 = vmatpush1.msra.mxu0 0.0
        %781 = vmatprep.subr.mxu0 0.0
        %782 = vmatpush1.msra.mxu0 0.0
        %783 = vmatprep.subr.mxu0 0.0
        %784 = vmatpush1.msra.mxu0 0.0
        %785 = vmatprep.subr.mxu0 0.0
        %786 = vmatpush1.msra.mxu0 0.0
        %787 = vmatprep.subr.mxu0 0.0
        %788 = vmatpush1.msra.mxu0 0.0
        %789 = vmatprep.subr.mxu0 0.0
        %790 = vmatpush1.msra.mxu0 0.0
        %791 = vmatprep.subr.mxu0 0.0
        %792 = vmatpush1.msra.mxu0 0.0
        %793 = vmatprep.subr.mxu0 0.0
        %794 = vmatpush1.msra.mxu0 0.0
        %795 = vmatprep.subr.mxu0 0.0
        %796 = vmatpush1.msra.mxu0 0.0
        %797 = vmatprep.subr.mxu0 0.0
        %798 = vmatpush1.msra.mxu0 0.0
        %799 = vmatprep.subr.mxu0 0.0
        %800 = vmatpush1.msra.mxu0 0.0
        %801 = vmatprep.subr.mxu0 0.0
        %802 = vmatpush1.msra.mxu0 0.0
        %803 = vmatprep.subr.mxu0 0.0
        %804 = vmatpush1.msra.mxu0 0.0
        %805 = vmatprep.subr.mxu0 0.0
        %806 = vmatpush1.msra.mxu0 0.0
        %807 = vmatprep.subr.mxu0 0.0
        %808 = vmatpush1.msra.mxu0 0.0
        %809 = vmatprep.subr.mxu0 0.0
        %810 = vmatpush1.msra.mxu0 0.0
        %811 = vmatprep.subr.mxu0 0.0
        %812 = vmatpush1.msra.mxu0 0.0
        %813 = vmatprep.subr.mxu0 0.0
        %814 = vmatpush1.msra.mxu0 0.0
        %815 = vmatprep.subr.mxu0 0.0
        %816 = vmatpush1.msra.mxu0 0.0
        %817 = vmatprep.subr.mxu0 0.0
        %818 = vmatpush1.msra.mxu0 0.0
        %819 = vmatprep.subr.mxu0 0.0
        %820 = vmatpush1.msra.mxu0 0.0
        %821 = vmatprep.subr.mxu0 0.0
        %822 = vmatpush1.msra.mxu0 0.0
        %823 = vmatprep.subr.mxu0 0.0
        %824 = vmatpush1.msra.mxu0 0.0
        %825 = vmatprep.subr.mxu0 0.0
        %826 = vmatpush1.msra.mxu0 0.0
        %827 = vmatprep.subr.mxu0 0.0
        %828 = vmatpush1.msra.mxu0 0.0
        %829 = vmatprep.subr.mxu0 0.0
        %830 = vmatpush1.msra.mxu0 0.0
        %831 = vmatprep.mubr.f32.mxu0 0.0
        %832 = vmatmul.mubr.f32.gmra.mrb[0].mxu0 %v762
        %v833 = vpop.f32.mrb[0].mxu0
        %v834 = vadd.f32 0.0, %v833
        %v835 = vpop.f32.mrb[0].mxu0
        %836 = vdwg.mxu0
        %v838 = vsel %vm335, %v751, 0
        %v841 = vsel %vm339, %v755, 0
        %843 = vmatprep.subr.mxu0 0.0
        %844 = vmatpush1.msra.mxu0 %v752
        %845 = vmatprep.subr.mxu0 0.0
        %846 = vmatpush1.msra.mxu0 %v753
        %847 = vmatprep.subr.mxu0 0.0
        %848 = vmatpush1.msra.mxu0 %v754
        %849 = vmatprep.subr.mxu0 0.0
        %850 = vmatpush1.msra.mxu0 %v841
        %851 = vmatprep.subr.mxu0 0.0
        %852 = vmatpush1.msra.mxu0 0.0
        %853 = vmatprep.subr.mxu0 0.0
        %854 = vmatpush1.msra.mxu0 0.0
        %855 = vmatprep.subr.mxu0 0.0
        %856 = vmatpush1.msra.mxu0 0.0
        %857 = vmatprep.subr.mxu0 0.0
        %858 = vmatpush1.msra.mxu0 0.0
        %859 = vmatprep.subr.mxu0 0.0
        %860 = vmatpush1.msra.mxu0 0.0
        %861 = vmatprep.subr.mxu0 0.0
        %862 = vmatpush1.msra.mxu0 0.0
        %863 = vmatprep.subr.mxu0 0.0
        %864 = vmatpush1.msra.mxu0 0.0
        %865 = vmatprep.subr.mxu0 0.0
        %866 = vmatpush1.msra.mxu0 0.0
        %867 = vmatprep.subr.mxu0 0.0
        %868 = vmatpush1.msra.mxu0 0.0
        %869 = vmatprep.subr.mxu0 0.0
        %870 = vmatpush1.msra.mxu0 0.0
        %871 = vmatprep.subr.mxu0 0.0
        %872 = vmatpush1.msra.mxu0 0.0
        %873 = vmatprep.subr.mxu0 0.0
        %874 = vmatpush1.msra.mxu0 0.0
        %875 = vmatprep.subr.mxu0 0.0
        %876 = vmatpush1.msra.mxu0 0.0
        %877 = vmatprep.subr.mxu0 0.0
        %878 = vmatpush1.msra.mxu0 0.0
        %879 = vmatprep.subr.mxu0 0.0
        %880 = vmatpush1.msra.mxu0 0.0
        %881 = vmatprep.subr.mxu0 0.0
        %882 = vmatpush1.msra.mxu0 0.0
        %883 = vmatprep.subr.mxu0 0.0
        %884 = vmatpush1.msra.mxu0 0.0
        %885 = vmatprep.subr.mxu0 0.0
        %886 = vmatpush1.msra.mxu0 0.0
        %887 = vmatprep.subr.mxu0 0.0
        %888 = vmatpush1.msra.mxu0 0.0
        %889 = vmatprep.subr.mxu0 0.0
        %890 = vmatpush1.msra.mxu0 0.0
        %891 = vmatprep.subr.mxu0 0.0
        %892 = vmatpush1.msra.mxu0 0.0
        %893 = vmatprep.subr.mxu0 0.0
        %894 = vmatpush1.msra.mxu0 0.0
        %895 = vmatprep.subr.mxu0 0.0
        %896 = vmatpush1.msra.mxu0 0.0
        %897 = vmatprep.subr.mxu0 0.0
        %898 = vmatpush1.msra.mxu0 0.0
        %899 = vmatprep.subr.mxu0 0.0
        %900 = vmatpush1.msra.mxu0 0.0
        %901 = vmatprep.subr.mxu0 0.0
        %902 = vmatpush1.msra.mxu0 0.0
        %903 = vmatprep.subr.mxu0 0.0
        %904 = vmatpush1.msra.mxu0 0.0
        %905 = vmatprep.subr.mxu0 0.0
        %906 = vmatpush1.msra.mxu0 0.0
        %907 = vmatprep.mubr.f32.mxu0 0.0
        %908 = vmatmul.mubr.f32.gmra.mrb[0].mxu0 %v838
        %v909 = vpop.f32.mrb[0].mxu0
        %v910 = vadd.f32 %v834, %v909
        %v911 = vpop.f32.mrb[0].mxu0
        %912 = vdwg.mxu0
        %v913 = vld [vmem:[%s291 + $0x1] sm:$0x3f]
        %v914 = vld [vmem:[%s491] sm:$0xff]
        %v915 = vld [vmem:[%s491 + $0x8] sm:$0xff]
        %v916 = vld [vmem:[%s491 + $0x10] sm:$0xff]
        %v917 = vld [vmem:[%s491 + $0x18] sm:$0xf]
        %v919 = vsel %vm335, %v913, 0
        %v922 = vsel %vm339, %v917, 0
        %924 = vmatprep.subr.mxu0 0.0
        %925 = vmatpush1.msra.mxu0 %v914
        %926 = vmatprep.subr.mxu0 0.0
        %927 = vmatpush1.msra.mxu0 %v915
        %928 = vmatprep.subr.mxu0 0.0
        %929 = vmatpush1.msra.mxu0 %v916
        %930 = vmatprep.subr.mxu0 0.0
        %931 = vmatpush1.msra.mxu0 %v922
        %932 = vmatprep.subr.mxu0 0.0
        %933 = vmatpush1.msra.mxu0 0.0
        %934 = vmatprep.subr.mxu0 0.0
        %935 = vmatpush1.msra.mxu0 0.0
        %936 = vmatprep.subr.mxu0 0.0
        %937 = vmatpush1.msra.mxu0 0.0
        %938 = vmatprep.subr.mxu0 0.0
        %939 = vmatpush1.msra.mxu0 0.0
        %940 = vmatprep.subr.mxu0 0.0
        %941 = vmatpush1.msra.mxu0 0.0
        %942 = vmatprep.subr.mxu0 0.0
        %943 = vmatpush1.msra.mxu0 0.0
        %944 = vmatprep.subr.mxu0 0.0
        %945 = vmatpush1.msra.mxu0 0.0
        %946 = vmatprep.subr.mxu0 0.0
        %947 = vmatpush1.msra.mxu0 0.0
        %948 = vmatprep.subr.mxu0 0.0
        %949 = vmatpush1.msra.mxu0 0.0
        %950 = vmatprep.subr.mxu0 0.0
        %951 = vmatpush1.msra.mxu0 0.0
        %952 = vmatprep.subr.mxu0 0.0
        %953 = vmatpush1.msra.mxu0 0.0
        %954 = vmatprep.subr.mxu0 0.0
        %955 = vmatpush1.msra.mxu0 0.0
        %956 = vmatprep.subr.mxu0 0.0
        %957 = vmatpush1.msra.mxu0 0.0
        %958 = vmatprep.subr.mxu0 0.0
        %959 = vmatpush1.msra.mxu0 0.0
        %960 = vmatprep.subr.mxu0 0.0
        %961 = vmatpush1.msra.mxu0 0.0
        %962 = vmatprep.subr.mxu0 0.0
        %963 = vmatpush1.msra.mxu0 0.0
        %964 = vmatprep.subr.mxu0 0.0
        %965 = vmatpush1.msra.mxu0 0.0
        %966 = vmatprep.subr.mxu0 0.0
        %967 = vmatpush1.msra.mxu0 0.0
        %968 = vmatprep.subr.mxu0 0.0
        %969 = vmatpush1.msra.mxu0 0.0
        %970 = vmatprep.subr.mxu0 0.0
        %971 = vmatpush1.msra.mxu0 0.0
        %972 = vmatprep.subr.mxu0 0.0
        %973 = vmatpush1.msra.mxu0 0.0
        %974 = vmatprep.subr.mxu0 0.0
        %975 = vmatpush1.msra.mxu0 0.0
        %976 = vmatprep.subr.mxu0 0.0
        %977 = vmatpush1.msra.mxu0 0.0
        %978 = vmatprep.subr.mxu0 0.0
        %979 = vmatpush1.msra.mxu0 0.0
        %980 = vmatprep.subr.mxu0 0.0
        %981 = vmatpush1.msra.mxu0 0.0
        %982 = vmatprep.subr.mxu0 0.0
        %983 = vmatpush1.msra.mxu0 0.0
        %984 = vmatprep.subr.mxu0 0.0
        %985 = vmatpush1.msra.mxu0 0.0
        %986 = vmatprep.subr.mxu0 0.0
        %987 = vmatpush1.msra.mxu0 0.0
        %988 = vmatprep.mubr.f32.mxu0 0.0
        %989 = vmatmul.mubr.f32.gmra.mrb[0].mxu0 %v919
        %v990 = vpop.f32.mrb[0].mxu0
        %v991 = vadd.f32 0.0, %v990
        %v992 = vpop.f32.mrb[0].mxu0
        %993 = vdwg.mxu0
        %v994 = vadd.f32 %v910, %v991
        %v995 = vld [vmem:[%s328 + $0x1] sm:$0x3f]
        %v996 = vld [vmem:[%s575] sm:$0xff]
        %v997 = vld [vmem:[%s575 + $0x8] sm:$0xff]
        %v998 = vld [vmem:[%s575 + $0x10] sm:$0xff]
        %v999 = vld [vmem:[%s575 + $0x18] sm:$0xf]
        %v1001 = vsel %vm335, %v995, 0
        %v1004 = vsel %vm339, %v999, 0
        %1006 = vmatprep.subr.mxu0 0.0
        %1007 = vmatpush1.msra.mxu0 %v996
        %1008 = vmatprep.subr.mxu0 0.0
        %1009 = vmatpush1.msra.mxu0 %v997
        %1010 = vmatprep.subr.mxu0 0.0
        %1011 = vmatpush1.msra.mxu0 %v998
        %1012 = vmatprep.subr.mxu0 0.0
        %1013 = vmatpush1.msra.mxu0 %v1004
        %1014 = vmatprep.subr.mxu0 0.0
        %1015 = vmatpush1.msra.mxu0 0.0
        %1016 = vmatprep.subr.mxu0 0.0
        %1017 = vmatpush1.msra.mxu0 0.0
        %1018 = vmatprep.subr.mxu0 0.0
        %1019 = vmatpush1.msra.mxu0 0.0
        %1020 = vmatprep.subr.mxu0 0.0
        %1021 = vmatpush1.msra.mxu0 0.0
        %1022 = vmatprep.subr.mxu0 0.0
        %1023 = vmatpush1.msra.mxu0 0.0
        %1024 = vmatprep.subr.mxu0 0.0
        %1025 = vmatpush1.msra.mxu0 0.0
        %1026 = vmatprep.subr.mxu0 0.0
        %1027 = vmatpush1.msra.mxu0 0.0
        %1028 = vmatprep.subr.mxu0 0.0
        %1029 = vmatpush1.msra.mxu0 0.0
        %1030 = vmatprep.subr.mxu0 0.0
        %1031 = vmatpush1.msra.mxu0 0.0
        %1032 = vmatprep.subr.mxu0 0.0
        %1033 = vmatpush1.msra.mxu0 0.0
        %1034 = vmatprep.subr.mxu0 0.0
        %1035 = vmatpush1.msra.mxu0 0.0
        %1036 = vmatprep.subr.mxu0 0.0
        %1037 = vmatpush1.msra.mxu0 0.0
        %1038 = vmatprep.subr.mxu0 0.0
        %1039 = vmatpush1.msra.mxu0 0.0
        %1040 = vmatprep.subr.mxu0 0.0
        %1041 = vmatpush1.msra.mxu0 0.0
        %1042 = vmatprep.subr.mxu0 0.0
        %1043 = vmatpush1.msra.mxu0 0.0
        %1044 = vmatprep.subr.mxu0 0.0
        %1045 = vmatpush1.msra.mxu0 0.0
        %1046 = vmatprep.subr.mxu0 0.0
        %1047 = vmatpush1.msra.mxu0 0.0
        %1048 = vmatprep.subr.mxu0 0.0
        %1049 = vmatpush1.msra.mxu0 0.0
        %1050 = vmatprep.subr.mxu0 0.0
        %1051 = vmatpush1.msra.mxu0 0.0
        %1052 = vmatprep.subr.mxu0 0.0
        %1053 = vmatpush1.msra.mxu0 0.0
        %1054 = vmatprep.subr.mxu0 0.0
        %1055 = vmatpush1.msra.mxu0 0.0
        %1056 = vmatprep.subr.mxu0 0.0
        %1057 = vmatpush1.msra.mxu0 0.0
        %1058 = vmatprep.subr.mxu0 0.0
        %1059 = vmatpush1.msra.mxu0 0.0
        %1060 = vmatprep.subr.mxu0 0.0
        %1061 = vmatpush1.msra.mxu0 0.0
        %1062 = vmatprep.subr.mxu0 0.0
        %1063 = vmatpush1.msra.mxu0 0.0
        %1064 = vmatprep.subr.mxu0 0.0
        %1065 = vmatpush1.msra.mxu0 0.0
        %1066 = vmatprep.subr.mxu0 0.0
        %1067 = vmatpush1.msra.mxu0 0.0
        %1068 = vmatprep.subr.mxu0 0.0
        %1069 = vmatpush1.msra.mxu0 0.0
        %1070 = vmatprep.mubr.f32.mxu0 0.0
        %1071 = vmatmul.mubr.f32.gmra.mrb[0].mxu0 %v1001
        %v1072 = vpop.f32.mrb[0].mxu0
        %v1073 = vadd.f32 0.0, %v1072
        %v1074 = vpop.f32.mrb[0].mxu0
        %1075 = vdwg.mxu0
        %v1076 = vadd.f32 %v994, %v1073
        %v1077 = vld [vmem:[%s489 + $0x1] sm:$0x3f]
        %v1078 = vld [vmem:[%s658] sm:$0xff]
        %v1079 = vld [vmem:[%s658 + $0x8] sm:$0xff]
        %v1080 = vld [vmem:[%s658 + $0x10] sm:$0xff]
        %v1081 = vld [vmem:[%s658 + $0x18] sm:$0xf]
        %v1083 = vsel %vm335, %v1077, 0
        %v1086 = vsel %vm339, %v1081, 0
        %1088 = vmatprep.subr.mxu0 0.0
        %1089 = vmatpush1.msra.mxu0 %v1078
        %1090 = vmatprep.subr.mxu0 0.0
        %1091 = vmatpush1.msra.mxu0 %v1079
        %1092 = vmatprep.subr.mxu0 0.0
        %1093 = vmatpush1.msra.mxu0 %v1080
        %1094 = vmatprep.subr.mxu0 0.0
        %1095 = vmatpush1.msra.mxu0 %v1086
        %1096 = vmatprep.subr.mxu0 0.0
        %1097 = vmatpush1.msra.mxu0 0.0
        %1098 = vmatprep.subr.mxu0 0.0
        %1099 = vmatpush1.msra.mxu0 0.0
        %1100 = vmatprep.subr.mxu0 0.0
        %1101 = vmatpush1.msra.mxu0 0.0
        %1102 = vmatprep.subr.mxu0 0.0
        %1103 = vmatpush1.msra.mxu0 0.0
        %1104 = vmatprep.subr.mxu0 0.0
        %1105 = vmatpush1.msra.mxu0 0.0
        %1106 = vmatprep.subr.mxu0 0.0
        %1107 = vmatpush1.msra.mxu0 0.0
        %1108 = vmatprep.subr.mxu0 0.0
        %1109 = vmatpush1.msra.mxu0 0.0
        %1110 = vmatprep.subr.mxu0 0.0
        %1111 = vmatpush1.msra.mxu0 0.0
        %1112 = vmatprep.subr.mxu0 0.0
        %1113 = vmatpush1.msra.mxu0 0.0
        %1114 = vmatprep.subr.mxu0 0.0
        %1115 = vmatpush1.msra.mxu0 0.0
        %1116 = vmatprep.subr.mxu0 0.0
        %1117 = vmatpush1.msra.mxu0 0.0
        %1118 = vmatprep.subr.mxu0 0.0
        %1119 = vmatpush1.msra.mxu0 0.0
        %1120 = vmatprep.subr.mxu0 0.0
        %1121 = vmatpush1.msra.mxu0 0.0
        %1122 = vmatprep.subr.mxu0 0.0
        %1123 = vmatpush1.msra.mxu0 0.0
        %1124 = vmatprep.subr.mxu0 0.0
        %1125 = vmatpush1.msra.mxu0 0.0
        %1126 = vmatprep.subr.mxu0 0.0
        %1127 = vmatpush1.msra.mxu0 0.0
        %1128 = vmatprep.subr.mxu0 0.0
        %1129 = vmatpush1.msra.mxu0 0.0
        %1130 = vmatprep.subr.mxu0 0.0
        %1131 = vmatpush1.msra.mxu0 0.0
        %1132 = vmatprep.subr.mxu0 0.0
        %1133 = vmatpush1.msra.mxu0 0.0
        %1134 = vmatprep.subr.mxu0 0.0
        %1135 = vmatpush1.msra.mxu0 0.0
        %1136 = vmatprep.subr.mxu0 0.0
        %1137 = vmatpush1.msra.mxu0 0.0
        %1138 = vmatprep.subr.mxu0 0.0
        %1139 = vmatpush1.msra.mxu0 0.0
        %1140 = vmatprep.subr.mxu0 0.0
        %1141 = vmatpush1.msra.mxu0 0.0
        %1142 = vmatprep.subr.mxu0 0.0
        %1143 = vmatpush1.msra.mxu0 0.0
        %1144 = vmatprep.subr.mxu0 0.0
        %1145 = vmatpush1.msra.mxu0 0.0
        %1146 = vmatprep.subr.mxu0 0.0
        %1147 = vmatpush1.msra.mxu0 0.0
        %1148 = vmatprep.subr.mxu0 0.0
        %1149 = vmatpush1.msra.mxu0 0.0
        %1150 = vmatprep.subr.mxu0 0.0
        %1151 = vmatpush1.msra.mxu0 0.0
        %1152 = vmatprep.mubr.f32.mxu0 0.0
        %1153 = vmatmul.mubr.f32.gmra.mrb[0].mxu0 %v1083
        %v1154 = vpop.f32.mrb[0].mxu0
        %v1155 = vadd.f32 0.0, %v1154
        %v1156 = vpop.f32.mrb[0].mxu0
        %1157 = vdwg.mxu0
        %v1158 = vadd.f32 %v1076, %v1155
        %v1159 = vld [vmem:[%s4] sm:$0x1]
        %v1161 = vlaneseq
        %v1162 = vshrl.u32 %v1161, 7
        %v1163 = vsub.s32 0, %v1162
        %v1164 = vrot.slane %v1159, %v1163
        %v1166 = vadd.f32 %v1158, %v1164
        %v1167 = vmax.f32 %v1166, 0.0
        %s1168 = scalar_lea.vmem [#allocation2], 8
        %1169 = vst.msk [vmem:[%s1168] sm:$0x3f] %vm749, %v1167
        %v1170 = vld [vmem:[#allocation2] sm:$0x1f]
        %v1171 = vld [vmem:[%s2] sm:$0xff]
        %v1172 = vld [vmem:[%s2 + $0x8] sm:$0xff]
        %v1173 = vld [vmem:[%s2 + $0x10] sm:$0xff]
        %v1174 = vld [vmem:[%s2 + $0x18] sm:$0xff]
        %v1175 = vld [vmem:[%s2 + $0x20] sm:$0xff]
        %v1176 = vld [vmem:[%s2 + $0x28] sm:$0xff]
        %v1177 = vld [vmem:[%s2 + $0x30] sm:$0xff]
        %v1178 = vld [vmem:[%s2 + $0x38] sm:$0xff]
        %v1179 = vld [vmem:[%s2 + $0x40] sm:$0xff]
        %v1180 = vld [vmem:[%s2 + $0x48] sm:$0xff]
        %v1181 = vld [vmem:[%s2 + $0x50] sm:$0xff]
        %v1182 = vld [vmem:[%s2 + $0x58] sm:$0xff]
        %v1183 = vld [vmem:[%s1168] sm:$0x1f]
        %s1184 = scalar_lea.vmem %s2, 96
        %v1185 = vld [vmem:[%s1184] sm:$0xff]
        %v1186 = vld [vmem:[%s1184 + $0x8] sm:$0xff]
        %v1187 = vld [vmem:[%s1184 + $0x10] sm:$0xff]
        %v1188 = vld [vmem:[%s1184 + $0x18] sm:$0xff]
        %v1189 = vld [vmem:[%s1184 + $0x20] sm:$0xff]
        %v1190 = vld [vmem:[%s1184 + $0x28] sm:$0xff]
        %v1191 = vld [vmem:[%s1184 + $0x30] sm:$0xff]
        %v1192 = vld [vmem:[%s1184 + $0x38] sm:$0xff]
        %v1193 = vld [vmem:[%s1184 + $0x40] sm:$0xff]
        %v1194 = vld [vmem:[%s1184 + $0x48] sm:$0xff]
        %v1195 = vld [vmem:[%s1184 + $0x50] sm:$0xff]
        %v1196 = vld [vmem:[%s1184 + $0x58] sm:$0xff]
        %vm1197 = vcmask 785408
        %v1199 = vsel %vm1197, %v1183, 0
        %1201 = vmatprep.subr.mxu0 0.0
        %1202 = vmatpush1.msra.mxu0 %v1185
        %1203 = vmatprep.subr.mxu0 0.0
        %1204 = vmatpush1.msra.mxu0 %v1186
        %1205 = vmatprep.subr.mxu0 0.0
        %1206 = vmatpush1.msra.mxu0 %v1187
        %1207 = vmatprep.subr.mxu0 0.0
        %1208 = vmatpush1.msra.mxu0 %v1188
        %1209 = vmatprep.subr.mxu0 0.0
        %1210 = vmatpush1.msra.mxu0 %v1189
        %1211 = vmatprep.subr.mxu0 0.0
        %1212 = vmatpush1.msra.mxu0 %v1190
        %1213 = vmatprep.subr.mxu0 0.0
        %1214 = vmatpush1.msra.mxu0 %v1191
        %1215 = vmatprep.subr.mxu0 0.0
        %1216 = vmatpush1.msra.mxu0 %v1192
        %1217 = vmatprep.subr.mxu0 0.0
        %1218 = vmatpush1.msra.mxu0 %v1193
        %1219 = vmatprep.subr.mxu0 0.0
        %1220 = vmatpush1.msra.mxu0 %v1194
        %1221 = vmatprep.subr.mxu0 0.0
        %1222 = vmatpush1.msra.mxu0 %v1195
        %1223 = vmatprep.subr.mxu0 0.0
        %1224 = vmatpush1.msra.mxu0 %v1196
        %1225 = vmatprep.subr.mxu0 0.0
        %1226 = vmatpush1.msra.mxu0 0.0
        %1227 = vmatprep.subr.mxu0 0.0
        %1228 = vmatpush1.msra.mxu0 0.0
        %1229 = vmatprep.subr.mxu0 0.0
        %1230 = vmatpush1.msra.mxu0 0.0
        %1231 = vmatprep.subr.mxu0 0.0
        %1232 = vmatpush1.msra.mxu0 0.0
        %1233 = vmatprep.subr.mxu0 0.0
        %1234 = vmatpush1.msra.mxu0 0.0
        %1235 = vmatprep.subr.mxu0 0.0
        %1236 = vmatpush1.msra.mxu0 0.0
        %1237 = vmatprep.subr.mxu0 0.0
        %1238 = vmatpush1.msra.mxu0 0.0
        %1239 = vmatprep.subr.mxu0 0.0
        %1240 = vmatpush1.msra.mxu0 0.0
        %1241 = vmatprep.subr.mxu0 0.0
        %1242 = vmatpush1.msra.mxu0 0.0
        %1243 = vmatprep.subr.mxu0 0.0
        %1244 = vmatpush1.msra.mxu0 0.0
        %1245 = vmatprep.subr.mxu0 0.0
        %1246 = vmatpush1.msra.mxu0 0.0
        %1247 = vmatprep.subr.mxu0 0.0
        %1248 = vmatpush1.msra.mxu0 0.0
        %1249 = vmatprep.subr.mxu0 0.0
        %1250 = vmatpush1.msra.mxu0 0.0
        %1251 = vmatprep.subr.mxu0 0.0
        %1252 = vmatpush1.msra.mxu0 0.0
        %1253 = vmatprep.subr.mxu0 0.0
        %1254 = vmatpush1.msra.mxu0 0.0
        %1255 = vmatprep.subr.mxu0 0.0
        %1256 = vmatpush1.msra.mxu0 0.0
        %1257 = vmatprep.subr.mxu0 0.0
        %1258 = vmatpush1.msra.mxu0 0.0
        %1259 = vmatprep.subr.mxu0 0.0
        %1260 = vmatpush1.msra.mxu0 0.0
        %1261 = vmatprep.subr.mxu0 0.0
        %1262 = vmatpush1.msra.mxu0 0.0
        %1263 = vmatprep.subr.mxu0 0.0
        %1264 = vmatpush1.msra.mxu0 0.0
        %1265 = vmatprep.mubr.f32.mxu0 0.0
        %1266 = vmatmul.mubr.f32.gmra.mrb[0].mxu0 %v1199
        %v1267 = vpop.f32.mrb[0].mxu0
        %v1268 = vadd.f32 0.0, %v1267
        %v1269 = vpop.f32.mrb[0].mxu0
        %1270 = vdwg.mxu0
        %v1272 = vsel %vm1197, %v1170, 0
        %1274 = vmatprep.subr.mxu0 0.0
        %1275 = vmatpush1.msra.mxu0 %v1171
        %1276 = vmatprep.subr.mxu0 0.0
        %1277 = vmatpush1.msra.mxu0 %v1172
        %1278 = vmatprep.subr.mxu0 0.0
        %1279 = vmatpush1.msra.mxu0 %v1173
        %1280 = vmatprep.subr.mxu0 0.0
        %1281 = vmatpush1.msra.mxu0 %v1174
        %1282 = vmatprep.subr.mxu0 0.0
        %1283 = vmatpush1.msra.mxu0 %v1175
        %1284 = vmatprep.subr.mxu0 0.0
        %1285 = vmatpush1.msra.mxu0 %v1176
        %1286 = vmatprep.subr.mxu0 0.0
        %1287 = vmatpush1.msra.mxu0 %v1177
        %1288 = vmatprep.subr.mxu0 0.0
        %1289 = vmatpush1.msra.mxu0 %v1178
        %1290 = vmatprep.subr.mxu0 0.0
        %1291 = vmatpush1.msra.mxu0 %v1179
        %1292 = vmatprep.subr.mxu0 0.0
        %1293 = vmatpush1.msra.mxu0 %v1180
        %1294 = vmatprep.subr.mxu0 0.0
        %1295 = vmatpush1.msra.mxu0 %v1181
        %1296 = vmatprep.subr.mxu0 0.0
        %1297 = vmatpush1.msra.mxu0 %v1182
        %1298 = vmatprep.subr.mxu0 0.0
        %1299 = vmatpush1.msra.mxu0 0.0
        %1300 = vmatprep.subr.mxu0 0.0
        %1301 = vmatpush1.msra.mxu0 0.0
        %1302 = vmatprep.subr.mxu0 0.0
        %1303 = vmatpush1.msra.mxu0 0.0
        %1304 = vmatprep.subr.mxu0 0.0
        %1305 = vmatpush1.msra.mxu0 0.0
        %1306 = vmatprep.subr.mxu0 0.0
        %1307 = vmatpush1.msra.mxu0 0.0
        %1308 = vmatprep.subr.mxu0 0.0
        %1309 = vmatpush1.msra.mxu0 0.0
        %1310 = vmatprep.subr.mxu0 0.0
        %1311 = vmatpush1.msra.mxu0 0.0
        %1312 = vmatprep.subr.mxu0 0.0
        %1313 = vmatpush1.msra.mxu0 0.0
        %1314 = vmatprep.subr.mxu0 0.0
        %1315 = vmatpush1.msra.mxu0 0.0
        %1316 = vmatprep.subr.mxu0 0.0
        %1317 = vmatpush1.msra.mxu0 0.0
        %1318 = vmatprep.subr.mxu0 0.0
        %1319 = vmatpush1.msra.mxu0 0.0
        %1320 = vmatprep.subr.mxu0 0.0
        %1321 = vmatpush1.msra.mxu0 0.0
        %1322 = vmatprep.subr.mxu0 0.0
        %1323 = vmatpush1.msra.mxu0 0.0
        %1324 = vmatprep.subr.mxu0 0.0
        %1325 = vmatpush1.msra.mxu0 0.0
        %1326 = vmatprep.subr.mxu0 0.0
        %1327 = vmatpush1.msra.mxu0 0.0
        %1328 = vmatprep.subr.mxu0 0.0
        %1329 = vmatpush1.msra.mxu0 0.0
        %1330 = vmatprep.subr.mxu0 0.0
        %1331 = vmatpush1.msra.mxu0 0.0
        %1332 = vmatprep.subr.mxu0 0.0
        %1333 = vmatpush1.msra.mxu0 0.0
        %1334 = vmatprep.subr.mxu0 0.0
        %1335 = vmatpush1.msra.mxu0 0.0
        %1336 = vmatprep.subr.mxu0 0.0
        %1337 = vmatpush1.msra.mxu0 0.0
        %1338 = vmatprep.mubr.f32.mxu0 0.0
        %1339 = vmatmul.mubr.f32.gmra.mrb[0].mxu0 %v1272
        %v1340 = vpop.f32.mrb[0].mxu0
        %v1341 = vadd.f32 %v1268, %v1340
        %v1342 = vpop.f32.mrb[0].mxu0
        %1343 = vdwg.mxu0
        %v1344 = vld [vmem:[#allocation2 + $0x1] sm:$0x1f]
        %s1345 = scalar_lea.vmem %s2, 192
        %v1346 = vld [vmem:[%s1345] sm:$0xff]
        %v1347 = vld [vmem:[%s1345 + $0x8] sm:$0xff]
        %v1348 = vld [vmem:[%s1345 + $0x10] sm:$0xff]
        %v1349 = vld [vmem:[%s1345 + $0x18] sm:$0xff]
        %v1350 = vld [vmem:[%s1345 + $0x20] sm:$0xff]
        %v1351 = vld [vmem:[%s1345 + $0x28] sm:$0xff]
        %v1352 = vld [vmem:[%s1345 + $0x30] sm:$0xff]
        %v1353 = vld [vmem:[%s1345 + $0x38] sm:$0xff]
        %v1354 = vld [vmem:[%s1345 + $0x40] sm:$0xff]
        %v1355 = vld [vmem:[%s1345 + $0x48] sm:$0xff]
        %v1356 = vld [vmem:[%s1345 + $0x50] sm:$0xff]
        %v1357 = vld [vmem:[%s1345 + $0x58] sm:$0xff]
        %v1359 = vsel %vm1197, %v1344, 0
        %1361 = vmatprep.subr.mxu0 0.0
        %1362 = vmatpush1.msra.mxu0 %v1346
        %1363 = vmatprep.subr.mxu0 0.0
        %1364 = vmatpush1.msra.mxu0 %v1347
        %1365 = vmatprep.subr.mxu0 0.0
        %1366 = vmatpush1.msra.mxu0 %v1348
        %1367 = vmatprep.subr.mxu0 0.0
        %1368 = vmatpush1.msra.mxu0 %v1349
        %1369 = vmatprep.subr.mxu0 0.0
        %1370 = vmatpush1.msra.mxu0 %v1350
        %1371 = vmatprep.subr.mxu0 0.0
        %1372 = vmatpush1.msra.mxu0 %v1351
        %1373 = vmatprep.subr.mxu0 0.0
        %1374 = vmatpush1.msra.mxu0 %v1352
        %1375 = vmatprep.subr.mxu0 0.0
        %1376 = vmatpush1.msra.mxu0 %v1353
        %1377 = vmatprep.subr.mxu0 0.0
        %1378 = vmatpush1.msra.mxu0 %v1354
        %1379 = vmatprep.subr.mxu0 0.0
        %1380 = vmatpush1.msra.mxu0 %v1355
        %1381 = vmatprep.subr.mxu0 0.0
        %1382 = vmatpush1.msra.mxu0 %v1356
        %1383 = vmatprep.subr.mxu0 0.0
        %1384 = vmatpush1.msra.mxu0 %v1357
        %1385 = vmatprep.subr.mxu0 0.0
        %1386 = vmatpush1.msra.mxu0 0.0
        %1387 = vmatprep.subr.mxu0 0.0
        %1388 = vmatpush1.msra.mxu0 0.0
        %1389 = vmatprep.subr.mxu0 0.0
        %1390 = vmatpush1.msra.mxu0 0.0
        %1391 = vmatprep.subr.mxu0 0.0
        %1392 = vmatpush1.msra.mxu0 0.0
        %1393 = vmatprep.subr.mxu0 0.0
        %1394 = vmatpush1.msra.mxu0 0.0
        %1395 = vmatprep.subr.mxu0 0.0
        %1396 = vmatpush1.msra.mxu0 0.0
        %1397 = vmatprep.subr.mxu0 0.0
        %1398 = vmatpush1.msra.mxu0 0.0
        %1399 = vmatprep.subr.mxu0 0.0
        %1400 = vmatpush1.msra.mxu0 0.0
        %1401 = vmatprep.subr.mxu0 0.0
        %1402 = vmatpush1.msra.mxu0 0.0
        %1403 = vmatprep.subr.mxu0 0.0
        %1404 = vmatpush1.msra.mxu0 0.0
        %1405 = vmatprep.subr.mxu0 0.0
        %1406 = vmatpush1.msra.mxu0 0.0
        %1407 = vmatprep.subr.mxu0 0.0
        %1408 = vmatpush1.msra.mxu0 0.0
        %1409 = vmatprep.subr.mxu0 0.0
        %1410 = vmatpush1.msra.mxu0 0.0
        %1411 = vmatprep.subr.mxu0 0.0
        %1412 = vmatpush1.msra.mxu0 0.0
        %1413 = vmatprep.subr.mxu0 0.0
        %1414 = vmatpush1.msra.mxu0 0.0
        %1415 = vmatprep.subr.mxu0 0.0
        %1416 = vmatpush1.msra.mxu0 0.0
        %1417 = vmatprep.subr.mxu0 0.0
        %1418 = vmatpush1.msra.mxu0 0.0
        %1419 = vmatprep.subr.mxu0 0.0
        %1420 = vmatpush1.msra.mxu0 0.0
        %1421 = vmatprep.subr.mxu0 0.0
        %1422 = vmatpush1.msra.mxu0 0.0
        %1423 = vmatprep.subr.mxu0 0.0
        %1424 = vmatpush1.msra.mxu0 0.0
        %1425 = vmatprep.mubr.f32.mxu0 0.0
        %1426 = vmatmul.mubr.f32.gmra.mrb[0].mxu0 %v1359
        %v1427 = vpop.f32.mrb[0].mxu0
        %v1428 = vadd.f32 0.0, %v1427
        %v1429 = vpop.f32.mrb[0].mxu0
        %1430 = vdwg.mxu0
        %v1431 = vadd.f32 %v1341, %v1428
        %v1432 = vld [vmem:[%s5] sm:$0x1]
        %v1434 = vlaneseq
        %v1435 = vshrl.u32 %v1434, 7
        %v1436 = vsub.s32 0, %v1435
        %v1437 = vrot.slane %v1432, %v1436
        %v1439 = vadd.f32 %v1431, %v1437
        %v1440 = vmax.f32 %v1439, 0.0
        %vm1441 = vcmask 651264
        %1442 = vst.msk [vmem:[#allocation3] sm:$0x1f] %vm1441, %v1440
        %v1443 = vld [vmem:[#allocation3] sm:$0x1]
        %v1444 = vld [vmem:[%s3] sm:$0xff]
        %v1445 = vld [vmem:[%s3 + $0x8] sm:$0xff]
        %v1446 = vld [vmem:[%s3 + $0x10] sm:$0xff]
        %v1447 = vld [vmem:[%s3 + $0x18] sm:$0xff]
        %v1448 = vld [vmem:[%s3 + $0x20] sm:$0xff]
        %v1449 = vld [vmem:[%s3 + $0x28] sm:$0xff]
        %v1450 = vld [vmem:[%s3 + $0x30] sm:$0xff]
        %v1451 = vld [vmem:[%s3 + $0x38] sm:$0xff]
        %v1452 = vld [vmem:[%s3 + $0x40] sm:$0xff]
        %v1453 = vld [vmem:[%s3 + $0x48] sm:$0xff]
        %v1454 = vld [vmem:[#allocation3 + $0x1] sm:$0x1]
        %s1455 = scalar_lea.vmem %s3, 80
        %v1456 = vld [vmem:[%s1455] sm:$0xff]
        %v1457 = vld [vmem:[%s1455 + $0x8] sm:$0xff]
        %v1458 = vld [vmem:[%s1455 + $0x10] sm:$0xff]
        %v1459 = vld [vmem:[%s1455 + $0x18] sm:$0xff]
        %v1460 = vld [vmem:[%s1455 + $0x20] sm:$0xff]
        %v1461 = vld [vmem:[%s1455 + $0x28] sm:$0xff]
        %v1462 = vld [vmem:[%s1455 + $0x30] sm:$0xff]
        %v1463 = vld [vmem:[%s1455 + $0x38] sm:$0xff]
        %v1464 = vld [vmem:[%s1455 + $0x40] sm:$0xff]
        %v1465 = vld [vmem:[%s1455 + $0x48] sm:$0xff]
        %vm1466 = vcmask 654336
        %v1468 = vsel %vm1466, %v1454, 0
        %1470 = vmatprep.subr.mxu0 0.0
        %1471 = vmatpush1.msra.mxu0 %v1456
        %1472 = vmatprep.subr.mxu0 0.0
        %1473 = vmatpush1.msra.mxu0 %v1457
        %1474 = vmatprep.subr.mxu0 0.0
        %1475 = vmatpush1.msra.mxu0 %v1458
        %1476 = vmatprep.subr.mxu0 0.0
        %1477 = vmatpush1.msra.mxu0 %v1459
        %1478 = vmatprep.subr.mxu0 0.0
        %1479 = vmatpush1.msra.mxu0 %v1460
        %1480 = vmatprep.subr.mxu0 0.0
        %1481 = vmatpush1.msra.mxu0 %v1461
        %1482 = vmatprep.subr.mxu0 0.0
        %1483 = vmatpush1.msra.mxu0 %v1462
        %1484 = vmatprep.subr.mxu0 0.0
        %1485 = vmatpush1.msra.mxu0 %v1463
        %1486 = vmatprep.subr.mxu0 0.0
        %1487 = vmatpush1.msra.mxu0 %v1464
        %1488 = vmatprep.subr.mxu0 0.0
        %1489 = vmatpush1.msra.mxu0 %v1465
        %1490 = vmatprep.subr.mxu0 0.0
        %1491 = vmatpush1.msra.mxu0 0.0
        %1492 = vmatprep.subr.mxu0 0.0
        %1493 = vmatpush1.msra.mxu0 0.0
        %1494 = vmatprep.subr.mxu0 0.0
        %1495 = vmatpush1.msra.mxu0 0.0
        %1496 = vmatprep.subr.mxu0 0.0
        %1497 = vmatpush1.msra.mxu0 0.0
        %1498 = vmatprep.subr.mxu0 0.0
        %1499 = vmatpush1.msra.mxu0 0.0
        %1500 = vmatprep.subr.mxu0 0.0
        %1501 = vmatpush1.msra.mxu0 0.0
        %1502 = vmatprep.subr.mxu0 0.0
        %1503 = vmatpush1.msra.mxu0 0.0
        %1504 = vmatprep.subr.mxu0 0.0
        %1505 = vmatpush1.msra.mxu0 0.0
        %1506 = vmatprep.subr.mxu0 0.0
        %1507 = vmatpush1.msra.mxu0 0.0
        %1508 = vmatprep.subr.mxu0 0.0
        %1509 = vmatpush1.msra.mxu0 0.0
        %1510 = vmatprep.subr.mxu0 0.0
        %1511 = vmatpush1.msra.mxu0 0.0
        %1512 = vmatprep.subr.mxu0 0.0
        %1513 = vmatpush1.msra.mxu0 0.0
        %1514 = vmatprep.subr.mxu0 0.0
        %1515 = vmatpush1.msra.mxu0 0.0
        %1516 = vmatprep.subr.mxu0 0.0
        %1517 = vmatpush1.msra.mxu0 0.0
        %1518 = vmatprep.subr.mxu0 0.0
        %1519 = vmatpush1.msra.mxu0 0.0
        %1520 = vmatprep.subr.mxu0 0.0
        %1521 = vmatpush1.msra.mxu0 0.0
        %1522 = vmatprep.subr.mxu0 0.0
        %1523 = vmatpush1.msra.mxu0 0.0
        %1524 = vmatprep.subr.mxu0 0.0
        %1525 = vmatpush1.msra.mxu0 0.0
        %1526 = vmatprep.subr.mxu0 0.0
        %1527 = vmatpush1.msra.mxu0 0.0
        %1528 = vmatprep.subr.mxu0 0.0
        %1529 = vmatpush1.msra.mxu0 0.0
        %1530 = vmatprep.subr.mxu0 0.0
        %1531 = vmatpush1.msra.mxu0 0.0
        %1532 = vmatprep.subr.mxu0 0.0
        %1533 = vmatpush1.msra.mxu0 0.0
        %1534 = vmatprep.mubr.f32.mxu0 0.0
        %1535 = vmatmul.mubr.f32.gmra.mrb[0].mxu0 %v1468
        %v1536 = vpop.f32.mrb[0].mxu0
        %v1537 = vadd.f32 0.0, %v1536
        %v1538 = vpop.f32.mrb[0].mxu0
        %1539 = vdwg.mxu0
        %v1541 = vsel %vm1466, %v1443, 0
        %1543 = vmatprep.subr.mxu0 0.0
        %1544 = vmatpush1.msra.mxu0 %v1444
        %1545 = vmatprep.subr.mxu0 0.0
        %1546 = vmatpush1.msra.mxu0 %v1445
        %1547 = vmatprep.subr.mxu0 0.0
        %1548 = vmatpush1.msra.mxu0 %v1446
        %1549 = vmatprep.subr.mxu0 0.0
        %1550 = vmatpush1.msra.mxu0 %v1447
        %1551 = vmatprep.subr.mxu0 0.0
        %1552 = vmatpush1.msra.mxu0 %v1448
        %1553 = vmatprep.subr.mxu0 0.0
        %1554 = vmatpush1.msra.mxu0 %v1449
        %1555 = vmatprep.subr.mxu0 0.0
        %1556 = vmatpush1.msra.mxu0 %v1450
        %1557 = vmatprep.subr.mxu0 0.0
        %1558 = vmatpush1.msra.mxu0 %v1451
        %1559 = vmatprep.subr.mxu0 0.0
        %1560 = vmatpush1.msra.mxu0 %v1452
        %1561 = vmatprep.subr.mxu0 0.0
        %1562 = vmatpush1.msra.mxu0 %v1453
        %1563 = vmatprep.subr.mxu0 0.0
        %1564 = vmatpush1.msra.mxu0 0.0
        %1565 = vmatprep.subr.mxu0 0.0
        %1566 = vmatpush1.msra.mxu0 0.0
        %1567 = vmatprep.subr.mxu0 0.0
        %1568 = vmatpush1.msra.mxu0 0.0
        %1569 = vmatprep.subr.mxu0 0.0
        %1570 = vmatpush1.msra.mxu0 0.0
        %1571 = vmatprep.subr.mxu0 0.0
        %1572 = vmatpush1.msra.mxu0 0.0
        %1573 = vmatprep.subr.mxu0 0.0
        %1574 = vmatpush1.msra.mxu0 0.0
        %1575 = vmatprep.subr.mxu0 0.0
        %1576 = vmatpush1.msra.mxu0 0.0
        %1577 = vmatprep.subr.mxu0 0.0
        %1578 = vmatpush1.msra.mxu0 0.0
        %1579 = vmatprep.subr.mxu0 0.0
        %1580 = vmatpush1.msra.mxu0 0.0
        %1581 = vmatprep.subr.mxu0 0.0
        %1582 = vmatpush1.msra.mxu0 0.0
        %1583 = vmatprep.subr.mxu0 0.0
        %1584 = vmatpush1.msra.mxu0 0.0
        %1585 = vmatprep.subr.mxu0 0.0
        %1586 = vmatpush1.msra.mxu0 0.0
        %1587 = vmatprep.subr.mxu0 0.0
        %1588 = vmatpush1.msra.mxu0 0.0
        %1589 = vmatprep.subr.mxu0 0.0
        %1590 = vmatpush1.msra.mxu0 0.0
        %1591 = vmatprep.subr.mxu0 0.0
        %1592 = vmatpush1.msra.mxu0 0.0
        %1593 = vmatprep.subr.mxu0 0.0
        %1594 = vmatpush1.msra.mxu0 0.0
        %1595 = vmatprep.subr.mxu0 0.0
        %1596 = vmatpush1.msra.mxu0 0.0
        %1597 = vmatprep.subr.mxu0 0.0
        %1598 = vmatpush1.msra.mxu0 0.0
        %1599 = vmatprep.subr.mxu0 0.0
        %1600 = vmatpush1.msra.mxu0 0.0
        %1601 = vmatprep.subr.mxu0 0.0
        %1602 = vmatpush1.msra.mxu0 0.0
        %1603 = vmatprep.subr.mxu0 0.0
        %1604 = vmatpush1.msra.mxu0 0.0
        %1605 = vmatprep.subr.mxu0 0.0
        %1606 = vmatpush1.msra.mxu0 0.0
        %1607 = vmatprep.mubr.f32.mxu0 0.0
        %1608 = vmatmul.mubr.f32.gmra.mrb[0].mxu0 %v1541
        %v1609 = vpop.f32.mrb[0].mxu0
        %v1610 = vadd.f32 %v1537, %v1609
        %v1611 = vpop.f32.mrb[0].mxu0
        %1612 = vdwg.mxu0
        %v1613 = vld [vmem:[#allocation3 + $0x2] sm:$0x1]
        %s1614 = scalar_lea.vmem %s3, 160
        %v1615 = vld [vmem:[%s1614] sm:$0xff]
        %v1616 = vld [vmem:[%s1614 + $0x8] sm:$0xff]
        %v1617 = vld [vmem:[%s1614 + $0x10] sm:$0xff]
        %v1618 = vld [vmem:[%s1614 + $0x18] sm:$0xff]
        %v1619 = vld [vmem:[%s1614 + $0x20] sm:$0xff]
        %v1620 = vld [vmem:[%s1614 + $0x28] sm:$0xff]
        %v1621 = vld [vmem:[%s1614 + $0x30] sm:$0xff]
        %v1622 = vld [vmem:[%s1614 + $0x38] sm:$0xff]
        %v1623 = vld [vmem:[%s1614 + $0x40] sm:$0xff]
        %v1624 = vld [vmem:[%s1614 + $0x48] sm:$0xff]
        %v1626 = vsel %vm1466, %v1613, 0
        %1628 = vmatprep.subr.mxu0 0.0
        %1629 = vmatpush1.msra.mxu0 %v1615
        %1630 = vmatprep.subr.mxu0 0.0
        %1631 = vmatpush1.msra.mxu0 %v1616
        %1632 = vmatprep.subr.mxu0 0.0
        %1633 = vmatpush1.msra.mxu0 %v1617
        %1634 = vmatprep.subr.mxu0 0.0
        %1635 = vmatpush1.msra.mxu0 %v1618
        %1636 = vmatprep.subr.mxu0 0.0
        %1637 = vmatpush1.msra.mxu0 %v1619
        %1638 = vmatprep.subr.mxu0 0.0
        %1639 = vmatpush1.msra.mxu0 %v1620
        %1640 = vmatprep.subr.mxu0 0.0
        %1641 = vmatpush1.msra.mxu0 %v1621
        %1642 = vmatprep.subr.mxu0 0.0
        %1643 = vmatpush1.msra.mxu0 %v1622
        %1644 = vmatprep.subr.mxu0 0.0
        %1645 = vmatpush1.msra.mxu0 %v1623
        %1646 = vmatprep.subr.mxu0 0.0
        %1647 = vmatpush1.msra.mxu0 %v1624
        %1648 = vmatprep.subr.mxu0 0.0
        %1649 = vmatpush1.msra.mxu0 0.0
        %1650 = vmatprep.subr.mxu0 0.0
        %1651 = vmatpush1.msra.mxu0 0.0
        %1652 = vmatprep.subr.mxu0 0.0
        %1653 = vmatpush1.msra.mxu0 0.0
        %1654 = vmatprep.subr.mxu0 0.0
        %1655 = vmatpush1.msra.mxu0 0.0
        %1656 = vmatprep.subr.mxu0 0.0
        %1657 = vmatpush1.msra.mxu0 0.0
        %1658 = vmatprep.subr.mxu0 0.0
        %1659 = vmatpush1.msra.mxu0 0.0
        %1660 = vmatprep.subr.mxu0 0.0
        %1661 = vmatpush1.msra.mxu0 0.0
        %1662 = vmatprep.subr.mxu0 0.0
        %1663 = vmatpush1.msra.mxu0 0.0
        %1664 = vmatprep.subr.mxu0 0.0
        %1665 = vmatpush1.msra.mxu0 0.0
        %1666 = vmatprep.subr.mxu0 0.0
        %1667 = vmatpush1.msra.mxu0 0.0
        %1668 = vmatprep.subr.mxu0 0.0
        %1669 = vmatpush1.msra.mxu0 0.0
        %1670 = vmatprep.subr.mxu0 0.0
        %1671 = vmatpush1.msra.mxu0 0.0
        %1672 = vmatprep.subr.mxu0 0.0
        %1673 = vmatpush1.msra.mxu0 0.0
        %1674 = vmatprep.subr.mxu0 0.0
        %1675 = vmatpush1.msra.mxu0 0.0
        %1676 = vmatprep.subr.mxu0 0.0
        %1677 = vmatpush1.msra.mxu0 0.0
        %1678 = vmatprep.subr.mxu0 0.0
        %1679 = vmatpush1.msra.mxu0 0.0
        %1680 = vmatprep.subr.mxu0 0.0
        %1681 = vmatpush1.msra.mxu0 0.0
        %1682 = vmatprep.subr.mxu0 0.0
        %1683 = vmatpush1.msra.mxu0 0.0
        %1684 = vmatprep.subr.mxu0 0.0
        %1685 = vmatpush1.msra.mxu0 0.0
        %1686 = vmatprep.subr.mxu0 0.0
        %1687 = vmatpush1.msra.mxu0 0.0
        %1688 = vmatprep.subr.mxu0 0.0
        %1689 = vmatpush1.msra.mxu0 0.0
        %1690 = vmatprep.subr.mxu0 0.0
        %1691 = vmatpush1.msra.mxu0 0.0
        %1692 = vmatprep.mubr.f32.mxu0 0.0
        %1693 = vmatmul.mubr.f32.gmra.mrb[0].mxu0 %v1626
        %v1694 = vpop.f32.mrb[0].mxu0
        %v1695 = vadd.f32 0.0, %v1694
        %v1696 = vpop.f32.mrb[0].mxu0
        %1697 = vdwg.mxu0
        %v1698 = vadd.f32 %v1610, %v1695
        %v1699 = vld [vmem:[%s6] sm:$0x1]
        %v1700 = vadd.f32 %v1698, %v1699
        %v1701 = vmax.f32 %v1700, 0.0
        %vm1702 = vcmask 516096
        %1703 = vst.msk [vmem:[%s322] sm:$0x1] %vm1702, %v1701
        %v1704 = vld [vmem:[#allocation3 + $0x2] sm:$0x1]
        %v1705 = vld [vmem:[%s3] sm:$0xff]
        %v1706 = vld [vmem:[%s3 + $0x8] sm:$0xff]
        %v1707 = vld [vmem:[%s3 + $0x10] sm:$0xff]
        %v1708 = vld [vmem:[%s3 + $0x18] sm:$0xff]
        %v1709 = vld [vmem:[%s3 + $0x20] sm:$0xff]
        %v1710 = vld [vmem:[%s3 + $0x28] sm:$0xff]
        %v1711 = vld [vmem:[%s3 + $0x30] sm:$0xff]
        %v1712 = vld [vmem:[%s3 + $0x38] sm:$0xff]
        %v1713 = vld [vmem:[%s3 + $0x40] sm:$0xff]
        %v1714 = vld [vmem:[%s3 + $0x48] sm:$0xff]
        %v1715 = vld [vmem:[#allocation3 + $0x3] sm:$0x1]
        %v1716 = vld [vmem:[%s1455] sm:$0xff]
        %v1717 = vld [vmem:[%s1455 + $0x8] sm:$0xff]
        %v1718 = vld [vmem:[%s1455 + $0x10] sm:$0xff]
        %v1719 = vld [vmem:[%s1455 + $0x18] sm:$0xff]
        %v1720 = vld [vmem:[%s1455 + $0x20] sm:$0xff]
        %v1721 = vld [vmem:[%s1455 + $0x28] sm:$0xff]
        %v1722 = vld [vmem:[%s1455 + $0x30] sm:$0xff]
        %v1723 = vld [vmem:[%s1455 + $0x38] sm:$0xff]
        %v1724 = vld [vmem:[%s1455 + $0x40] sm:$0xff]
        %v1725 = vld [vmem:[%s1455 + $0x48] sm:$0xff]
        %v1727 = vsel %vm1466, %v1715, 0
        %1729 = vmatprep.subr.mxu0 0.0
        %1730 = vmatpush1.msra.mxu0 %v1716
        %1731 = vmatprep.subr.mxu0 0.0
        %1732 = vmatpush1.msra.mxu0 %v1717
        %1733 = vmatprep.subr.mxu0 0.0
        %1734 = vmatpush1.msra.mxu0 %v1718
        %1735 = vmatprep.subr.mxu0 0.0
        %1736 = vmatpush1.msra.mxu0 %v1719
        %1737 = vmatprep.subr.mxu0 0.0
        %1738 = vmatpush1.msra.mxu0 %v1720
        %1739 = vmatprep.subr.mxu0 0.0
        %1740 = vmatpush1.msra.mxu0 %v1721
        %1741 = vmatprep.subr.mxu0 0.0
        %1742 = vmatpush1.msra.mxu0 %v1722
        %1743 = vmatprep.subr.mxu0 0.0
        %1744 = vmatpush1.msra.mxu0 %v1723
        %1745 = vmatprep.subr.mxu0 0.0
        %1746 = vmatpush1.msra.mxu0 %v1724
        %1747 = vmatprep.subr.mxu0 0.0
        %1748 = vmatpush1.msra.mxu0 %v1725
        %1749 = vmatprep.subr.mxu0 0.0
        %1750 = vmatpush1.msra.mxu0 0.0
        %1751 = vmatprep.subr.mxu0 0.0
        %1752 = vmatpush1.msra.mxu0 0.0
        %1753 = vmatprep.subr.mxu0 0.0
        %1754 = vmatpush1.msra.mxu0 0.0
        %1755 = vmatprep.subr.mxu0 0.0
        %1756 = vmatpush1.msra.mxu0 0.0
        %1757 = vmatprep.subr.mxu0 0.0
        %1758 = vmatpush1.msra.mxu0 0.0
        %1759 = vmatprep.subr.mxu0 0.0
        %1760 = vmatpush1.msra.mxu0 0.0
        %1761 = vmatprep.subr.mxu0 0.0
        %1762 = vmatpush1.msra.mxu0 0.0
        %1763 = vmatprep.subr.mxu0 0.0
        %1764 = vmatpush1.msra.mxu0 0.0
        %1765 = vmatprep.subr.mxu0 0.0
        %1766 = vmatpush1.msra.mxu0 0.0
        %1767 = vmatprep.subr.mxu0 0.0
        %1768 = vmatpush1.msra.mxu0 0.0
        %1769 = vmatprep.subr.mxu0 0.0
        %1770 = vmatpush1.msra.mxu0 0.0
        %1771 = vmatprep.subr.mxu0 0.0
        %1772 = vmatpush1.msra.mxu0 0.0
        %1773 = vmatprep.subr.mxu0 0.0
        %1774 = vmatpush1.msra.mxu0 0.0
        %1775 = vmatprep.subr.mxu0 0.0
        %1776 = vmatpush1.msra.mxu0 0.0
        %1777 = vmatprep.subr.mxu0 0.0
        %1778 = vmatpush1.msra.mxu0 0.0
        %1779 = vmatprep.subr.mxu0 0.0
        %1780 = vmatpush1.msra.mxu0 0.0
        %1781 = vmatprep.subr.mxu0 0.0
        %1782 = vmatpush1.msra.mxu0 0.0
        %1783 = vmatprep.subr.mxu0 0.0
        %1784 = vmatpush1.msra.mxu0 0.0
        %1785 = vmatprep.subr.mxu0 0.0
        %1786 = vmatpush1.msra.mxu0 0.0
        %1787 = vmatprep.subr.mxu0 0.0
        %1788 = vmatpush1.msra.mxu0 0.0
        %1789 = vmatprep.subr.mxu0 0.0
        %1790 = vmatpush1.msra.mxu0 0.0
        %1791 = vmatprep.subr.mxu0 0.0
        %1792 = vmatpush1.msra.mxu0 0.0
        %1793 = vmatprep.mubr.f32.mxu0 0.0
        %1794 = vmatmul.mubr.f32.gmra.mrb[0].mxu0 %v1727
        %v1795 = vpop.f32.mrb[0].mxu0
        %v1796 = vadd.f32 0.0, %v1795
        %v1797 = vpop.f32.mrb[0].mxu0
        %1798 = vdwg.mxu0
        %v1800 = vsel %vm1466, %v1704, 0
        %1802 = vmatprep.subr.mxu0 0.0
        %1803 = vmatpush1.msra.mxu0 %v1705
        %1804 = vmatprep.subr.mxu0 0.0
        %1805 = vmatpush1.msra.mxu0 %v1706
        %1806 = vmatprep.subr.mxu0 0.0
        %1807 = vmatpush1.msra.mxu0 %v1707
        %1808 = vmatprep.subr.mxu0 0.0
        %1809 = vmatpush1.msra.mxu0 %v1708
        %1810 = vmatprep.subr.mxu0 0.0
        %1811 = vmatpush1.msra.mxu0 %v1709
        %1812 = vmatprep.subr.mxu0 0.0
        %1813 = vmatpush1.msra.mxu0 %v1710
        %1814 = vmatprep.subr.mxu0 0.0
        %1815 = vmatpush1.msra.mxu0 %v1711
        %1816 = vmatprep.subr.mxu0 0.0
        %1817 = vmatpush1.msra.mxu0 %v1712
        %1818 = vmatprep.subr.mxu0 0.0
        %1819 = vmatpush1.msra.mxu0 %v1713
        %1820 = vmatprep.subr.mxu0 0.0
        %1821 = vmatpush1.msra.mxu0 %v1714
        %1822 = vmatprep.subr.mxu0 0.0
        %1823 = vmatpush1.msra.mxu0 0.0
        %1824 = vmatprep.subr.mxu0 0.0
        %1825 = vmatpush1.msra.mxu0 0.0
        %1826 = vmatprep.subr.mxu0 0.0
        %1827 = vmatpush1.msra.mxu0 0.0
        %1828 = vmatprep.subr.mxu0 0.0
        %1829 = vmatpush1.msra.mxu0 0.0
        %1830 = vmatprep.subr.mxu0 0.0
        %1831 = vmatpush1.msra.mxu0 0.0
        %1832 = vmatprep.subr.mxu0 0.0
        %1833 = vmatpush1.msra.mxu0 0.0
        %1834 = vmatprep.subr.mxu0 0.0
        %1835 = vmatpush1.msra.mxu0 0.0
        %1836 = vmatprep.subr.mxu0 0.0
        %1837 = vmatpush1.msra.mxu0 0.0
        %1838 = vmatprep.subr.mxu0 0.0
        %1839 = vmatpush1.msra.mxu0 0.0
        %1840 = vmatprep.subr.mxu0 0.0
        %1841 = vmatpush1.msra.mxu0 0.0
        %1842 = vmatprep.subr.mxu0 0.0
        %1843 = vmatpush1.msra.mxu0 0.0
        %1844 = vmatprep.subr.mxu0 0.0
        %1845 = vmatpush1.msra.mxu0 0.0
        %1846 = vmatprep.subr.mxu0 0.0
        %1847 = vmatpush1.msra.mxu0 0.0
        %1848 = vmatprep.subr.mxu0 0.0
        %1849 = vmatpush1.msra.mxu0 0.0
        %1850 = vmatprep.subr.mxu0 0.0
        %1851 = vmatpush1.msra.mxu0 0.0
        %1852 = vmatprep.subr.mxu0 0.0
        %1853 = vmatpush1.msra.mxu0 0.0
        %1854 = vmatprep.subr.mxu0 0.0
        %1855 = vmatpush1.msra.mxu0 0.0
        %1856 = vmatprep.subr.mxu0 0.0
        %1857 = vmatpush1.msra.mxu0 0.0
        %1858 = vmatprep.subr.mxu0 0.0
        %1859 = vmatpush1.msra.mxu0 0.0
        %1860 = vmatprep.subr.mxu0 0.0
        %1861 = vmatpush1.msra.mxu0 0.0
        %1862 = vmatprep.subr.mxu0 0.0
        %1863 = vmatpush1.msra.mxu0 0.0
        %1864 = vmatprep.subr.mxu0 0.0
        %1865 = vmatpush1.msra.mxu0 0.0
        %1866 = vmatprep.mubr.f32.mxu0 0.0
        %1867 = vmatmul.mubr.f32.gmra.mrb[0].mxu0 %v1800
        %v1868 = vpop.f32.mrb[0].mxu0
        %v1869 = vadd.f32 %v1796, %v1868
        %v1870 = vpop.f32.mrb[0].mxu0
        %1871 = vdwg.mxu0
        %v1872 = vld [vmem:[#allocation3 + $0x4] sm:$0x1]
        %v1873 = vld [vmem:[%s1614] sm:$0xff]
        %v1874 = vld [vmem:[%s1614 + $0x8] sm:$0xff]
        %v1875 = vld [vmem:[%s1614 + $0x10] sm:$0xff]
        %v1876 = vld [vmem:[%s1614 + $0x18] sm:$0xff]
        %v1877 = vld [vmem:[%s1614 + $0x20] sm:$0xff]
        %v1878 = vld [vmem:[%s1614 + $0x28] sm:$0xff]
        %v1879 = vld [vmem:[%s1614 + $0x30] sm:$0xff]
        %v1880 = vld [vmem:[%s1614 + $0x38] sm:$0xff]
        %v1881 = vld [vmem:[%s1614 + $0x40] sm:$0xff]
        %v1882 = vld [vmem:[%s1614 + $0x48] sm:$0xff]
        %v1884 = vsel %vm1466, %v1872, 0
        %1886 = vmatprep.subr.mxu0 0.0
        %1887 = vmatpush1.msra.mxu0 %v1873
        %1888 = vmatprep.subr.mxu0 0.0
        %1889 = vmatpush1.msra.mxu0 %v1874
        %1890 = vmatprep.subr.mxu0 0.0
        %1891 = vmatpush1.msra.mxu0 %v1875
        %1892 = vmatprep.subr.mxu0 0.0
        %1893 = vmatpush1.msra.mxu0 %v1876
        %1894 = vmatprep.subr.mxu0 0.0
        %1895 = vmatpush1.msra.mxu0 %v1877
        %1896 = vmatprep.subr.mxu0 0.0
        %1897 = vmatpush1.msra.mxu0 %v1878
        %1898 = vmatprep.subr.mxu0 0.0
        %1899 = vmatpush1.msra.mxu0 %v1879
        %1900 = vmatprep.subr.mxu0 0.0
        %1901 = vmatpush1.msra.mxu0 %v1880
        %1902 = vmatprep.subr.mxu0 0.0
        %1903 = vmatpush1.msra.mxu0 %v1881
        %1904 = vmatprep.subr.mxu0 0.0
        %1905 = vmatpush1.msra.mxu0 %v1882
        %1906 = vmatprep.subr.mxu0 0.0
        %1907 = vmatpush1.msra.mxu0 0.0
        %1908 = vmatprep.subr.mxu0 0.0
        %1909 = vmatpush1.msra.mxu0 0.0
        %1910 = vmatprep.subr.mxu0 0.0
        %1911 = vmatpush1.msra.mxu0 0.0
        %1912 = vmatprep.subr.mxu0 0.0
        %1913 = vmatpush1.msra.mxu0 0.0
        %1914 = vmatprep.subr.mxu0 0.0
        %1915 = vmatpush1.msra.mxu0 0.0
        %1916 = vmatprep.subr.mxu0 0.0
        %1917 = vmatpush1.msra.mxu0 0.0
        %1918 = vmatprep.subr.mxu0 0.0
        %1919 = vmatpush1.msra.mxu0 0.0
        %1920 = vmatprep.subr.mxu0 0.0
        %1921 = vmatpush1.msra.mxu0 0.0
        %1922 = vmatprep.subr.mxu0 0.0
        %1923 = vmatpush1.msra.mxu0 0.0
        %1924 = vmatprep.subr.mxu0 0.0
        %1925 = vmatpush1.msra.mxu0 0.0
        %1926 = vmatprep.subr.mxu0 0.0
        %1927 = vmatpush1.msra.mxu0 0.0
        %1928 = vmatprep.subr.mxu0 0.0
        %1929 = vmatpush1.msra.mxu0 0.0
        %1930 = vmatprep.subr.mxu0 0.0
        %1931 = vmatpush1.msra.mxu0 0.0
        %1932 = vmatprep.subr.mxu0 0.0
        %1933 = vmatpush1.msra.mxu0 0.0
        %1934 = vmatprep.subr.mxu0 0.0
        %1935 = vmatpush1.msra.mxu0 0.0
        %1936 = vmatprep.subr.mxu0 0.0
        %1937 = vmatpush1.msra.mxu0 0.0
        %1938 = vmatprep.subr.mxu0 0.0
        %1939 = vmatpush1.msra.mxu0 0.0
        %1940 = vmatprep.subr.mxu0 0.0
        %1941 = vmatpush1.msra.mxu0 0.0
        %1942 = vmatprep.subr.mxu0 0.0
        %1943 = vmatpush1.msra.mxu0 0.0
        %1944 = vmatprep.subr.mxu0 0.0
        %1945 = vmatpush1.msra.mxu0 0.0
        %1946 = vmatprep.subr.mxu0 0.0
        %1947 = vmatpush1.msra.mxu0 0.0
        %1948 = vmatprep.subr.mxu0 0.0
        %1949 = vmatpush1.msra.mxu0 0.0
        %1950 = vmatprep.mubr.f32.mxu0 0.0
        %1951 = vmatmul.mubr.f32.gmra.mrb[0].mxu0 %v1884
        %v1952 = vpop.f32.mrb[0].mxu0
        %v1953 = vadd.f32 0.0, %v1952
        %v1954 = vpop.f32.mrb[0].mxu0
        %1955 = vdwg.mxu0
        %v1956 = vadd.f32 %v1869, %v1953
        %v1957 = vld [vmem:[%s6] sm:$0x1]
        %v1958 = vadd.f32 %v1956, %v1957
        %v1959 = vmax.f32 %v1958, 0.0
        %1960 = vst.msk [vmem:[%s322 + $0x1] sm:$0x1] %vm1702, %v1959
        %p1961 = scmp.lt.s32.totalorder %s18, 1
        %s1962 = scalar_select %p1961, %s18, 1
        %s1963 = smul.addr %s1962, 2
        %s1964 = scalar_lea.vmem %s7, %s1963
        // Predicated region
        $region87: #{encoder_forward.1} parent=81 // pred_check
          %p1965 = pneg %p188
        $region88: #{encoder_forward.1} parent=81 // pred_check_branch
          %1967 = sbr.rel (%p1965) target = $region90
        $region89: #{encoder_forward.1} parent=81 // pred_region
          _
        $region90: #{encoder_forward.1} parent=81 // pred_fallthru
          _
      $region82: #{encoder_forward.1} parent=5 // pred_fallthru
        _
      %p1968 = scmp.le.s32.totalorder 2, %s13
      // Predicated region
      $region91: #{encoder_forward.1} parent=5 // pred_check
        %p1969 = pneg %p1968
      $region92: #{encoder_forward.1} parent=5 // pred_check_branch
        %1971 = sbr.rel (%p1969) target = $region94
      $region93: #{encoder_forward.1} parent=5 // pred_region
        %s1972 = ssub.s32 %s13, 2
        // Predicated region
        $region95: #{encoder_forward.1} parent=93 // pred_check
          %p1973 = pneg %p194
        $region96: #{encoder_forward.1} parent=93 // pred_check_branch
          %1975 = sbr.rel (%p1973) target = $region98
        $region97: #{encoder_forward.1} parent=93 // pred_region
          %p1976 = scmp.lt.s32.totalorder %s19, 1
          %s1977 = scalar_select %p1976, %s19, 1
          %s1978 = smul.addr %s1977, 2
          %s1979 = scalar_lea.vmem %s7, %s1978
        $region98: #{encoder_forward.1} parent=93 // pred_fallthru
          _
      $region94: #{encoder_forward.1} parent=5 // pred_fallthru
        _
    $region6: #{encoder_forward.1} parent=1 // loop_footer
      %s17 = sadd.s32 1, %s13
    $region7: #{encoder_forward.1} parent=1 // loop_footer_branch
      %12 = sbr.rel target = $region3
    $region8: #{encoder_forward.1} parent=1 // loop_exit
      _

</llo_original>
